<compile_context>
chip_gen: v7x
topology: tpu7x:2x2x1
jax: 0.10.0
libtpu: 0.0.40
codegen_flags: <defaults>
</compile_context>

<pallas_src>
import functools

import jax
import jax.numpy as jnp
from jax.experimental import pallas as pl
from jax.experimental.pallas import tpu as pltpu


# --------------------------------------------------------------------------
# Fused kernel: q/k/v 1x1-conv projections + softmax(q^T k) + att @ V +
# gamma*out + x, per batch element and per query tile.  All in-kernel tensors
# are points-major / channel-lane-dense except the K scratch, which is
# channel-major (C8, L) so it is lane-dense too.
# --------------------------------------------------------------------------
def _attention_kernel(xt_ref, wqt_ref, bq_ref, wk_ref, bk_ref, wvt_ref, bv_ref,
                      gam_ref, o_ref, kt_ref, vt_ref, *, approx_softmax):
    # xt_ref : (L, C)   f32  transposed input for this batch element
    # wqt_ref: (C, C8)  cd   Wq^T   (resident in VMEM, constant index map)
    # bq_ref : (1, C8)  f32
    # wk_ref : (C8, C)  cd   Wk     (original orientation -> NT projection)
    # bk_ref : (C8, 1)  f32
    # wvt_ref: (C, C)   cd   Wv^T
    # bv_ref : (1, C)   f32
    # gam_ref: (1,)     f32  (SMEM)
    # o_ref  : (tq, C)  f32  output rows for this query tile
    # kt_ref : (C8, L)  cd   scratch: K projection, reused across query tiles
    # vt_ref : (L, C)   cd   scratch: V projection, reused across query tiles
    qi = pl.program_id(1)
    cdt = kt_ref.dtype

    # K / V projections once per batch element (query-tile axis is innermost).
    @pl.when(qi == 0)
    def _():
        xb = xt_ref[...].astype(cdt)                                  # (L, C)
        kt = jax.lax.dot_general(wk_ref[...], xb, (((1,), (1,)), ((), ())),
                                 preferred_element_type=jnp.float32)  # (C8, L)
        kt_ref[...] = (kt + bk_ref[...]).astype(cdt)
        v = jnp.dot(xb, wvt_ref[...], preferred_element_type=jnp.float32)
        vt_ref[...] = (v + bv_ref[...]).astype(cdt)                   # (L, C)

    tq = o_ref.shape[0]
    row0 = pl.multiple_of(qi * tq, tq)
    xq = xt_ref[pl.ds(row0, tq), :]                                   # (tq, C) f32

    # Q projection for this tile (contraction depth C).
    q = (jnp.dot(xq.astype(cdt), wqt_ref[...],
                 preferred_element_type=jnp.float32) + bq_ref[...])   # (tq, C8)

    # energy[i, j] = sum_c q[i, c] * k[c, j]   (plain NN matmul, lane-dense).
    energy = jnp.dot(q.astype(cdt), kt_ref[...],
                     preferred_element_type=jnp.float32)              # (tq, L)

    # Row softmax over the key axis (f32).  Exact reciprocal by default; the
    # EUP-approx path is opt-in because it visibly perturbs the result.
    energy = energy - jnp.max(energy, axis=-1, keepdims=True)
    p = jnp.exp(energy)
    denom = jnp.sum(p, axis=-1, keepdims=True)
    att = p * pl.reciprocal(denom, approx=approx_softmax)             # (tq, L)

    # out[i, c] = sum_j att[i, j] * v[j, c]   (contraction depth L).
    out = jnp.dot(att.astype(cdt), vt_ref[...],
                  preferred_element_type=jnp.float32)                 # (tq, C)

    # Residual + learned gamma; residual stays f32, store is lane-dense.
    o_ref[...] = gam_ref[0] * out + xq


# --------------------------------------------------------------------------
# VMEM budgeting helpers (generation aware).
# --------------------------------------------------------------------------
def _physical_vmem_bytes():
    try:
        info = pltpu.get_tpu_info()
        for attr in ("vmem_capacity_bytes", "vmem_size_bytes", "vmem_bytes"):
            cap = getattr(info, attr, None)
            if cap:
                return int(cap)
    except Exception:
        pass
    return 64 << 20  # conservative: v7x per-TensorCore VMEM


def _vmem_estimate_bytes(L, C, C8, tq, cd_bytes):
    f32 = 4
    weights = (C * C8 + C8 * C + C * C) * cd_bytes + (2 * C8 * 128 + C) * f32
    return int(
        2 * L * C * f32            # x block (double buffered)
        + 2 * tq * C * f32         # out block (double buffered)
        + C8 * L * cd_bytes        # K scratch (lane-dense)
        + L * C * cd_bytes         # V scratch
        + L * C * cd_bytes         # bf16 copy of x at qi == 0
        + 3 * tq * L * f32         # energy / p / att live f32 temporaries
        + tq * 128 * f32           # per-tile q (lane padded)
        + 2 * weights)             # resident weights (double-buffered specs)


# --------------------------------------------------------------------------
# Wrapper: PyTorch-compatible (N, C, L) in / (N, C, L) out by default.
# Set channels_last=True to work directly in (N, L, C) and skip both
# wrapper transposes (layout feedback).
# --------------------------------------------------------------------------
def self_attention_block(x, wq, bq, wk, bk, wv, bv, gamma, *,
                         tq=None, compute_dtype=jnp.bfloat16,
                         channels_last=False, approx_softmax=False):
    """Equivalent of SelfAttentionBlock.forward.

    x     : (N, C, L) float32 (or (N, L, C) if channels_last=True)
    wq,wk : (C//8, C), bq,bk : (C//8,)
    wv    : (C, C),    bv    : (C,)
    gamma : scalar
    """
    x = jnp.asarray(x)
    xt = x.astype(jnp.float32) if channels_last else \
        jnp.transpose(x, (0, 2, 1)).astype(jnp.float32)               # (N, L, C)
    N, L, C = xt.shape
    C8 = wq.shape[0]
    assert wq.shape == (C8, C) and wv.shape == (C, C)
    assert C % 128 == 0, "in_channels must be a multiple of 128 (lane-dense)"

    cd = compute_dtype
    cd_bytes = jnp.dtype(cd).itemsize

    # ---- query-tile selection (smaller default tile, VMEM-budget aware) ----
    if tq is None:
        if L % 256 == 0:
            tq = 256
        elif L % 128 == 0:
            tq = 128
        else:
            tq = L
    assert L % tq == 0, "L must be a multiple of the query tile size"
    assert tq == L or tq % 128 == 0

    phys = _physical_vmem_bytes()
    budget = int(0.85 * phys)
    while (_vmem_estimate_bytes(L, C, C8, tq, cd_bytes) > budget
           and tq % 256 == 0):
        tq //= 2
    n_q = L // tq
    est = _vmem_estimate_bytes(L, C, C8, tq, cd_bytes)
    vmem_limit = int(min(max(2 * est, 32 << 20), budget))

    # ---- weights: cast matmul operands to the compute dtype; biases f32 ----
    wq_t = jnp.transpose(wq).astype(cd)                    # (C, C8)
    bq_r = bq.astype(jnp.float32).reshape(1, C8)
    wk_c = wk.astype(cd)                                   # (C8, C)
    bk_r = bk.astype(jnp.float32).reshape(C8, 1)
    wv_t = jnp.transpose(wv).astype(cd)                    # (C, C)
    bv_r = bv.astype(jnp.float32).reshape(1, C)
    gam = jnp.asarray(gamma, jnp.float32).reshape(1)

    kernel = functools.partial(_attention_kernel, approx_softmax=approx_softmax)

    out_t = pl.pallas_call(
        kernel,
        out_shape=jax.ShapeDtypeStruct((N, L, C), jnp.float32),
        grid=(N, n_q),
        in_specs=[
            pl.BlockSpec((None, L, C), lambda n, q: (n, 0, 0)),   # x (transposed)
            pl.BlockSpec((C, C8), lambda n, q: (0, 0)),           # Wq^T (resident)
            pl.BlockSpec((1, C8), lambda n, q: (0, 0)),           # bq
            pl.BlockSpec((C8, C), lambda n, q: (0, 0)),           # Wk (resident)
            pl.BlockSpec((C8, 1), lambda n, q: (0, 0)),           # bk
            pl.BlockSpec((C, C), lambda n, q: (0, 0)),            # Wv^T (resident)
            pl.BlockSpec((1, C), lambda n, q: (0, 0)),            # bv
            pl.BlockSpec(memory_space=pltpu.MemorySpace.SMEM),    # gamma (scalar)
        ],
        out_specs=pl.BlockSpec((None, tq, C), lambda n, q: (n, q, 0)),
        scratch_shapes=[
            pltpu.VMEM((C8, L), cd),                              # K projection
            pltpu.VMEM((L, C), cd),                               # V projection
        ],
        compiler_params=pltpu.CompilerParams(
            dimension_semantics=("parallel", "arbitrary"),
            vmem_limit_bytes=vmem_limit),
    )(xt, wq_t, bq_r, wk_c, bk_r, wv_t, bv_r, gam)

    return out_t if channels_last else jnp.transpose(out_t, (0, 2, 1))


# --------------------------------------------------------------------------
# Pure-JAX references.
#   compute_dtype=None  -> full-f32 reference at Precision.HIGHEST.
#   compute_dtype=bf16  -> mirrors the kernel's bf16-operand / f32-accumulate
#                          precision choices (validates the kernel math).
# --------------------------------------------------------------------------
def _reference(x, wq, bq, wk, bk, wv, bv, gamma, *, compute_dtype=None):
    f32 = jnp.float32
    x = x.astype(f32)
    if compute_dtype is None:
        hp = jax.lax.Precision.HIGHEST
        q = jnp.einsum("oc,ncl->nol", wq, x, precision=hp) + bq[None, :, None]
        k = jnp.einsum("oc,ncl->nol", wk, x, precision=hp) + bk[None, :, None]
        v = jnp.einsum("oc,ncl->nol", wv, x, precision=hp) + bv[None, :, None]
        energy = jnp.einsum("ncl,ncm->nlm", q, k, precision=hp)
        att = jax.nn.softmax(energy, axis=-1)
        out = jnp.einsum("ncm,nlm->ncl", v, att, precision=hp)
        return gamma * out + x

    cd = compute_dtype
    xb = x.astype(cd)
    q = (jnp.einsum("oc,ncl->nol", wq.astype(cd), xb,
                    preferred_element_type=f32) + bq[None, :, None]).astype(cd)
    k = (jnp.einsum("oc,ncl->nol", wk.astype(cd), xb,
                    preferred_element_type=f32) + bk[None, :, None]).astype(cd)
    v = (jnp.einsum("oc,ncl->nol", wv.astype(cd), xb,
                    preferred_element_type=f32) + bv[None, :, None]).astype(cd)
    energy = jnp.einsum("ncl,ncm->nlm", q, k, preferred_element_type=f32)
    att = jax.nn.softmax(energy.astype(f32), axis=-1)
    out = jnp.einsum("ncm,nlm->ncl", v, att.astype(cd),
                     preferred_element_type=f32)
    return gamma * out + x


# --------------------------------------------------------------------------
if __name__ == "__main__":
    key = jax.random.PRNGKey(0)
    kx, kq, kk, kv, kbq, kbk, kbv = jax.random.split(key, 7)

    N, C, L = 2, 128, 256          # small shapes: batch=2, channels=128, 256 points
    C8 = C // 8
    ws = 0.5 * (2.0 / C) ** 0.5    # moderate logit scale -> well-conditioned softmax

    x = jax.random.normal(kx, (N, C, L), jnp.float32)
    wq = jax.random.normal(kq, (C8, C), jnp.float32) * ws
    wk = jax.random.normal(kk, (C8, C), jnp.float32) * ws
    wv = jax.random.normal(kv, (C, C), jnp.float32) * (2.0 / C) ** 0.5
    bq = jax.random.normal(kbq, (C8,), jnp.float32) * 0.05
    bk = jax.random.normal(kbk, (C8,), jnp.float32) * 0.05
    bv = jax.random.normal(kbv, (C,), jnp.float32) * 0.05
    # PyTorch initializes gamma to 0 (attention branch off); use a nonzero
    # value so the test exercises the attention path.
    gamma = jnp.float32(0.5)

    # Default (bf16 MXU operands) path, two query tiles (tq=128, n_q=2).
    fwd = jax.jit(functools.partial(self_attention_block, tq=128))
    out = jax.block_until_ready(fwd(x, wq, bq, wk, bk, wv, bv, gamma))
    assert out.shape == (N, C, L) and out.dtype == jnp.float32
    assert bool(jnp.all(jnp.isfinite(out)))

    # (1) Kernel vs a reference mirroring its bf16/f32 precision choices.
    ref_mixed = _reference(x, wq, bq, wk, bk, wv, bv, gamma,
                           compute_dtype=jnp.bfloat16)
    err_mixed = float(jnp.max(jnp.abs(out - ref_mixed)))
    assert err_mixed < 3e-2, f"kernel vs mixed-precision reference: {err_mixed}"

    # (2) Kernel vs the full-f32 reference (bounds the bf16 precision loss).
    ref_f32 = _reference(x, wq, bq, wk, bk, wv, bv, gamma)
    err_f32 = float(jnp.max(jnp.abs(out - ref_f32)))
    assert err_f32 < 2e-1, f"kernel (bf16 MXU) vs f32 reference: {err_f32}"

    # (3) f32 compute path tracks the f32 reference closely.
    out32 = jax.block_until_ready(
        jax.jit(functools.partial(self_attention_block, tq=128,
                                  compute_dtype=jnp.float32))(
            x, wq, bq, wk, bk, wv, bv, gamma))
    err32 = float(jnp.max(jnp.abs(out32 - ref_f32)))
    assert err32 < 3e-2, f"kernel (f32) vs f32 reference: {err32}"

    # (4) channels_last path (no wrapper transposes) agrees with the default.
    out_cl = jax.block_until_ready(
        jax.jit(functools.partial(self_attention_block, channels_last=True))(
            jnp.transpose(x, (0, 2, 1)), wq, bq, wk, bk, wv, bv, gamma))
    err_cl = float(jnp.max(jnp.abs(jnp.transpose(out_cl, (0, 2, 1)) - out)))
    assert err_cl < 1e-3, f"channels_last path mismatch: {err_cl}"

    print("KERNEL_OK")
</pallas_src>

<mosaic_0001>
module attributes {stable_mosaic.version = 11 : i64} {
  func.func @_attention_kernel(%arg0: i32, %arg1: i32, %arg2: memref<1x256x128xf32, #tpu.memory_space<vmem>>, %arg3: memref<128x16xbf16, #tpu.memory_space<vmem>>, %arg4: memref<1x16xf32, #tpu.memory_space<vmem>>, %arg5: memref<16x128xbf16, #tpu.memory_space<vmem>>, %arg6: memref<16x1xf32, #tpu.memory_space<vmem>>, %arg7: memref<128x128xbf16, #tpu.memory_space<vmem>>, %arg8: memref<1x128xf32, #tpu.memory_space<vmem>>, %arg9: memref<1xf32, #tpu.memory_space<smem>>, %arg10: memref<1x128x128xf32, #tpu.memory_space<vmem>>, %arg11: memref<16x256xbf16, #tpu.memory_space<vmem>>, %arg12: memref<256x128xbf16, #tpu.memory_space<vmem>>) attributes {dimension_semantics = [#tpu.dimension_semantics<parallel>, #tpu.dimension_semantics<arbitrary>], iteration_bounds = array<i64: 2, 2>, scalar_prefetch = 0 : i64, scratch_operands = 2 : i64, tpu.core_type = #tpu.core_type<tc>, window_params = [{transform_indices = @transform_0, window_bounds = array<i64: 1, 256, 128>}, {pipeline_mode = #tpu.pipeline_mode<synchronous>, transform_indices = @transform_1, window_bounds = array<i64: 128, 16>}, {pipeline_mode = #tpu.pipeline_mode<synchronous>, transform_indices = @transform_2, window_bounds = array<i64: 1, 16>}, {pipeline_mode = #tpu.pipeline_mode<synchronous>, transform_indices = @transform_3, window_bounds = array<i64: 16, 128>}, {pipeline_mode = #tpu.pipeline_mode<synchronous>, transform_indices = @transform_4, window_bounds = array<i64: 16, 1>}, {pipeline_mode = #tpu.pipeline_mode<synchronous>, transform_indices = @transform_5, window_bounds = array<i64: 128, 128>}, {pipeline_mode = #tpu.pipeline_mode<synchronous>, transform_indices = @transform_6, window_bounds = array<i64: 1, 128>}, {transform_indices = @transform_7, window_bounds = array<i64: 1>}, {transform_indices = @transform_8, window_bounds = array<i64: 1, 128, 128>}]} {
    %c0_i32 = arith.constant 0 : i32
    %0 = arith.cmpi eq, %arg1, %c0_i32 : i32
    %1 = arith.extui %0 : i1 to i32
    %c0_i32_0 = arith.constant 0 : i32
    %2 = arith.cmpi ne, %1, %c0_i32_0 : i32
    scf.if %2 {
      %c0_18 = arith.constant 0 : index
      %c0_19 = arith.constant 0 : index
      %c0_20 = arith.constant 0 : index
      %37 = vector.load %arg2[%c0_18, %c0_19, %c0_20] : memref<1x256x128xf32, #tpu.memory_space<vmem>>, vector<1x256x128xf32>
      %38 = vector.shape_cast %37 : vector<1x256x128xf32> to vector<256x128xf32>
      %39 = arith.truncf %38 : vector<256x128xf32> to vector<256x128xbf16>
      %c0_21 = arith.constant 0 : index
      %c0_22 = arith.constant 0 : index
      %40 = vector.load %arg5[%c0_21, %c0_22] : memref<16x128xbf16, #tpu.memory_space<vmem>>, vector<16x128xbf16>
      %cst_23 = arith.constant dense<0.000000e+00> : vector<16x256xf32>
      %41 = tpu.matmul %40, %39, %cst_23 {dimension_numbers = #tpu.dot_dimension_numbers<[1], [1], [0], [0], [0, 0, 1, 0], [], []>} : vector<16x128xbf16>, vector<256x128xbf16>, vector<16x256xf32> -> vector<16x256xf32>
      %c0_24 = arith.constant 0 : index
      %c0_25 = arith.constant 0 : index
      %42 = vector.load %arg6[%c0_24, %c0_25] : memref<16x1xf32, #tpu.memory_space<vmem>>, vector<16x1xf32>
      %43 = vector.broadcast %42 : vector<16x1xf32> to vector<16x256xf32>
      %44 = arith.addf %41, %43 : vector<16x256xf32>
      %45 = arith.truncf %44 : vector<16x256xf32> to vector<16x256xbf16>
      %c0_26 = arith.constant 0 : index
      %c0_27 = arith.constant 0 : index
      %46 = vector.load %arg11[%c0_26, %c0_27] : memref<16x256xbf16, #tpu.memory_space<vmem>>, vector<16x256xbf16>
      tpu.vector_store %arg11[%c0_26, %c0_27], %45 {strides = array<i32>} : memref<16x256xbf16, #tpu.memory_space<vmem>>, vector<16x256xbf16>,
      %c0_28 = arith.constant 0 : index
      %c0_29 = arith.constant 0 : index
      %47 = vector.load %arg7[%c0_28, %c0_29] : memref<128x128xbf16, #tpu.memory_space<vmem>>, vector<128x128xbf16>
      %cst_30 = arith.constant dense<0.000000e+00> : vector<256x128xf32>
      %48 = tpu.matmul %39, %47, %cst_30 {dimension_numbers = #tpu.dot_dimension_numbers<[1], [0], [0], [1], [0, 0, 1, 1], [], []>} : vector<256x128xbf16>, vector<128x128xbf16>, vector<256x128xf32> -> vector<256x128xf32>
      %c0_31 = arith.constant 0 : index
      %c0_32 = arith.constant 0 : index
      %49 = vector.load %arg8[%c0_31, %c0_32] : memref<1x128xf32, #tpu.memory_space<vmem>>, vector<1x128xf32>
      %50 = vector.broadcast %49 : vector<1x128xf32> to vector<256x128xf32>
      %51 = arith.addf %48, %50 : vector<256x128xf32>
      %52 = arith.truncf %51 : vector<256x128xf32> to vector<256x128xbf16>
      %c0_33 = arith.constant 0 : index
      %c0_34 = arith.constant 0 : index
      %53 = vector.load %arg12[%c0_33, %c0_34] : memref<256x128xbf16, #tpu.memory_space<vmem>>, vector<256x128xbf16>
      tpu.vector_store %arg12[%c0_33, %c0_34], %52 {strides = array<i32>} : memref<256x128xbf16, #tpu.memory_space<vmem>>, vector<256x128xbf16>,
    } else {
    }
    %c128_i32 = arith.constant 128 : i32
    %3 = arith.muli %arg1, %c128_i32 : i32
    %4 = tpu.assume_multiple %3, 128 : i32
    %c0 = arith.constant 0 : index
    %5 = arith.index_cast %4 : i32 to index
    %c0_1 = arith.constant 0 : index
    %6 = vector.load %arg2[%c0, %5, %c0_1] : memref<1x256x128xf32, #tpu.memory_space<vmem>>, vector<1x128x128xf32>
    %7 = vector.shape_cast %6 : vector<1x128x128xf32> to vector<128x128xf32>
    %8 = arith.truncf %7 : vector<128x128xf32> to vector<128x128xbf16>
    %c0_2 = arith.constant 0 : index
    %c0_3 = arith.constant 0 : index
    %9 = vector.load %arg3[%c0_2, %c0_3] : memref<128x16xbf16, #tpu.memory_space<vmem>>, vector<128x16xbf16>
    %cst = arith.constant dense<0.000000e+00> : vector<128x16xf32>
    %10 = tpu.matmul %8, %9, %cst {dimension_numbers = #tpu.dot_dimension_numbers<[1], [0], [0], [1], [0, 0, 1, 1], [], []>} : vector<128x128xbf16>, vector<128x16xbf16>, vector<128x16xf32> -> vector<128x16xf32>
    %c0_4 = arith.constant 0 : index
    %c0_5 = arith.constant 0 : index
    %11 = vector.load %arg4[%c0_4, %c0_5] : memref<1x16xf32, #tpu.memory_space<vmem>>, vector<1x16xf32>
    %12 = vector.broadcast %11 : vector<1x16xf32> to vector<128x16xf32>
    %13 = arith.addf %10, %12 : vector<128x16xf32>
    %14 = arith.truncf %13 : vector<128x16xf32> to vector<128x16xbf16>
    %c0_6 = arith.constant 0 : index
    %c0_7 = arith.constant 0 : index
    %15 = vector.load %arg11[%c0_6, %c0_7] : memref<16x256xbf16, #tpu.memory_space<vmem>>, vector<16x256xbf16>
    %cst_8 = arith.constant dense<0.000000e+00> : vector<128x256xf32>
    %16 = tpu.matmul %14, %15, %cst_8 {dimension_numbers = #tpu.dot_dimension_numbers<[1], [0], [0], [1], [0, 0, 1, 1], [], []>} : vector<128x16xbf16>, vector<16x256xbf16>, vector<128x256xf32> -> vector<128x256xf32>
    %cst_9 = arith.constant dense<0xFF800000> : vector<128xf32>
    %17 = vector.multi_reduction <maximumf>, %16, %cst_9 [1] : vector<128x256xf32> to vector<128xf32>
    %18 = vector.shape_cast %17 : vector<128xf32> to vector<128x1xf32>
    %19 = vector.broadcast %18 : vector<128x1xf32> to vector<128x256xf32>
    %20 = arith.subf %16, %19 : vector<128x256xf32>
    %21 = math.exp %20 : vector<128x256xf32>
    %cst_10 = arith.constant dense<0.000000e+00> : vector<128xf32>
    %22 = vector.multi_reduction <add>, %21, %cst_10 [1] : vector<128x256xf32> to vector<128xf32>
    %23 = vector.shape_cast %22 : vector<128xf32> to vector<128x1xf32>
    %24 = tpu.reciprocal %23 : vector<128x1xf32> -> vector<128x1xf32>
    %25 = vector.broadcast %24 : vector<128x1xf32> to vector<128x256xf32>
    %26 = arith.mulf %21, %25 : vector<128x256xf32>
    %27 = arith.truncf %26 : vector<128x256xf32> to vector<128x256xbf16>
    %c0_11 = arith.constant 0 : index
    %c0_12 = arith.constant 0 : index
    %28 = vector.load %arg12[%c0_11, %c0_12] : memref<256x128xbf16, #tpu.memory_space<vmem>>, vector<256x128xbf16>
    %cst_13 = arith.constant dense<0.000000e+00> : vector<128x128xf32>
    %29 = tpu.matmul %27, %28, %cst_13 {dimension_numbers = #tpu.dot_dimension_numbers<[1], [0], [0], [1], [0, 0, 1, 1], [], []>} : vector<128x256xbf16>, vector<256x128xbf16>, vector<128x128xf32> -> vector<128x128xf32>
    %c0_14 = arith.constant 0 : index
    %30 = memref.load %arg9[%c0_14] : memref<1xf32, #tpu.memory_space<smem>>
    %31 = vector.broadcast %30 : f32 to vector<128x128xf32>
    %32 = arith.mulf %31, %29 : vector<128x128xf32>
    %33 = arith.addf %32, %7 : vector<128x128xf32>
    %c0_15 = arith.constant 0 : index
    %c0_16 = arith.constant 0 : index
    %c0_17 = arith.constant 0 : index
    %34 = vector.load %arg10[%c0_15, %c0_16, %c0_17] : memref<1x128x128xf32, #tpu.memory_space<vmem>>, vector<1x128x128xf32>
    %35 = vector.shape_cast %34 : vector<1x128x128xf32> to vector<128x128xf32>
    %36 = vector.shape_cast %33 : vector<128x128xf32> to vector<1x128x128xf32>
    tpu.vector_store %arg10[%c0_15, %c0_16, %c0_17], %36 {strides = array<i32>} : memref<1x128x128xf32, #tpu.memory_space<vmem>>, vector<1x128x128xf32>,
    return
  }
  func.func @transform_0(%arg0: i32, %arg1: i32) -> (i32, i32, i32) {
    %c0_i32 = arith.constant 0 : i32
    %c0_i32_0 = arith.constant 0 : i32
    %c0_i32_1 = arith.constant 0 : i32
    return %arg0, %c0_i32, %c0_i32_0 : i32, i32, i32
  }
  func.func @transform_1(%arg0: i32, %arg1: i32) -> (i32, i32) {
    %c0_i32 = arith.constant 0 : i32
    %c0_i32_0 = arith.constant 0 : i32
    %c0_i32_1 = arith.constant 0 : i32
    return %c0_i32, %c0_i32_0 : i32, i32
  }
  func.func @transform_2(%arg0: i32, %arg1: i32) -> (i32, i32) {
    %c0_i32 = arith.constant 0 : i32
    %c0_i32_0 = arith.constant 0 : i32
    %c0_i32_1 = arith.constant 0 : i32
    return %c0_i32, %c0_i32_0 : i32, i32
  }
  func.func @transform_3(%arg0: i32, %arg1: i32) -> (i32, i32) {
    %c0_i32 = arith.constant 0 : i32
    %c0_i32_0 = arith.constant 0 : i32
    %c0_i32_1 = arith.constant 0 : i32
    return %c0_i32, %c0_i32_0 : i32, i32
  }
  func.func @transform_4(%arg0: i32, %arg1: i32) -> (i32, i32) {
    %c0_i32 = arith.constant 0 : i32
    %c0_i32_0 = arith.constant 0 : i32
    %c0_i32_1 = arith.constant 0 : i32
    return %c0_i32, %c0_i32_0 : i32, i32
  }
  func.func @transform_5(%arg0: i32, %arg1: i32) -> (i32, i32) {
    %c0_i32 = arith.constant 0 : i32
    %c0_i32_0 = arith.constant 0 : i32
    %c0_i32_1 = arith.constant 0 : i32
    return %c0_i32, %c0_i32_0 : i32, i32
  }
  func.func @transform_6(%arg0: i32, %arg1: i32) -> (i32, i32) {
    %c0_i32 = arith.constant 0 : i32
    %c0_i32_0 = arith.constant 0 : i32
    %c0_i32_1 = arith.constant 0 : i32
    return %c0_i32, %c0_i32_0 : i32, i32
  }
  func.func @transform_7(%arg0: i32, %arg1: i32) -> i32 {
    %c0_i32 = arith.constant 0 : i32
    %c0_i32_0 = arith.constant 0 : i32
    return %c0_i32 : i32
  }
  func.func @transform_8(%arg0: i32, %arg1: i32) -> (i32, i32, i32) {
    %c0_i32 = arith.constant 0 : i32
    %c0_i32_0 = arith.constant 0 : i32
    return %arg0, %arg1, %c0_i32 : i32, i32, i32
  }
}

</mosaic_0001>

<llo_original>
// kernel: self_attention_block.1
$region0: #{self_attention_block.1}
  #allocation0 [shape = 'u32[]', space=smem, size = 0x4, offset = 0x4, fixed_abs, tag = 'smem constant byte address 0x4 - core index']
  #allocation1 [shape = 'u32[144,128]{1,0:T(1,128)}', space=vmem, size = 0x12000, scoped, tag = 'internal scratch']
  #allocation2 [shape = 'bf16[16,256]{1,0:T(16,128)(2,1)}', space=vmem, size = 0x2000, scoped, tag = 'scratch operand']
  #allocation3 [shape = 'bf16[256,128]{1,0:T(16,128)(2,1)}', space=vmem, size = 0x10000, scoped, tag = 'scratch operand']
  #allocation4 [shape = 'f32[1]{0:T(128)S(6)}', space=smem, size = 0x200, scoped, tag = 'scoped memory for self_attention_block.1']
  %s0 = inlined_call_operand.vmem [shape: f32[2,256,128], index: 0, kind: input, shape index: {}]
  %s1 = inlined_call_operand.vmem [shape: bf16[128,16], index: 1, kind: input, shape index: {}]
  %s2 = inlined_call_operand.vmem [shape: f32[1,16], index: 2, kind: input, shape index: {}]
  %s3 = inlined_call_operand.vmem [shape: bf16[16,128], index: 3, kind: input, shape index: {}]
  %s4 = inlined_call_operand.vmem [shape: f32[16,1], index: 4, kind: input, shape index: {}]
  %s5 = inlined_call_operand.vmem [shape: bf16[128,128], index: 5, kind: input, shape index: {}]
  %s6 = inlined_call_operand.vmem [shape: f32[1,128], index: 6, kind: input, shape index: {}]
  %s7 = inlined_call_operand.<no memory space> [shape: f32[1], index: 7, kind: input, shape index: {}]
  %s8 = inlined_call_operand.vmem [shape: f32[2,256,128], index: 8, kind: output, shape index: {}]
  %s9 = sld [smem:[#allocation0]]
  $region69: #{self_attention_block.1} parent=0
    _
  %s11 = ssub.s32 1, %s9
  %s12 = scalar_select 0, %s11, %s9
  %13 = sst [smem:[#allocation4]] %s7
  loop: start=0, step=1, limit=6
  $region2: #{self_attention_block.1} parent=0 // loop_pre_header
    _
  $region3: #{self_attention_block.1} parent=0 // loop_header
    %s15 = sphi 0, %s19
    %p16 = scmp.ge.s32.totalorder %s15, 6
    %s22 = sphi 0, %s34
    %s23 = sphi 0, %s30
    %s24 = sphi 0, %s22
    %s25 = sphi 0, %s23
    %s26 = sphi 0, %s24
    %s27 = sphi 0, %s25
    %s37 = sphi 0, %s39
    %s40 = sphi 0, %s37
    %s41 = sphi 0, %s40
    %s57 = sphi 0, %s41
    %s61 = sphi 0, %s61
    %s63 = sphi 0, %s61
    %s64 = sphi 0, %s63
    %s78 = sphi 0, %s64
    %s82 = sphi 0, %s82
    %s84 = sphi 0, %s82
    %s85 = sphi 0, %s84
    %s99 = sphi 0, %s85
    %s103 = sphi 0, %s103
    %s105 = sphi 0, %s103
    %s106 = sphi 0, %s105
    %s120 = sphi 0, %s106
    %s124 = sphi 0, %s124
    %s126 = sphi 0, %s124
    %s127 = sphi 0, %s126
    %s141 = sphi 0, %s127
    %s145 = sphi 0, %s145
    %s147 = sphi 0, %s145
    %s148 = sphi 0, %s147
    %s162 = sphi 0, %s148
    %s166 = sphi 0, %s166
    %s168 = sphi 0, %s166
    %s169 = sphi 0, %s168
    %s183 = sphi 0, %s169
    %s187 = sphi 0, %s187
    %s189 = sphi 0, %s187
    %s190 = sphi 0, %s189
    %s204 = sphi 0, %s190
    %s212 = sphi 0, %s214
    %s215 = sphi 0, %s212
    %s216 = sphi 0, %s215
    %s232 = sphi 0, %s216
  $region4: #{self_attention_block.1} parent=0 // loop_header_branch
    %18 = sbr.rel (%p16) target = $region8
  $region5: #{self_attention_block.1} parent=0 // loop_body
    %s20 = ssub.s32 %s15, 1
    %s21 = ssub.s32 %s15, 2
    %s28 = sadd.s32 1, %s23
    %p29 = scmp.ge.s32.totalorder %s28, 2
    %s30 = scalar_select %p29, 0, %s28
    %s31 = sadd.s32 1, %s22
    %s32 = scalar_select %p29, %s31, %s22
    %p33 = scmp.ge.s32.totalorder %s32, 2
    %s34 = scalar_select %p33, 0, %s32
    %s35 = ssub.s32 %s22, %s34
    %p36 = scmp.eq.s32.totalorder %s35, 0
    %s38 = sadd.s32 %s37, 1
    %s39 = scalar_select %p36, %s37, %s38
    %p42 = pneg %p36
    %p43 = scmp.eq.s32.totalorder %s15, 3
    %p44 = por %p42, %p43
    %p45 = scmp.ne.s32.totalorder %s37, %s40
    %p46 = scmp.eq.s32.totalorder %s15, 0
    %p47 = por %p45, %p46
    %p48 = scmp.ne.s32.totalorder %s37, %s40
    %p49 = scmp.eq.s32.totalorder %s20, 3
    %p50 = por %p48, %p49
    %p51 = scmp.ne.s32.totalorder %s40, %s41
    %p52 = scmp.eq.s32.totalorder %s20, 0
    %p53 = por %p51, %p52
    %p54 = scmp.ne.s32.totalorder %s40, %s41
    %p55 = scmp.eq.s32.totalorder %s21, 3
    %p56 = por %p54, %p55
    %p58 = scmp.ne.s32.totalorder %s41, %s57
    %p59 = scmp.eq.s32.totalorder %s21, 0
    %p60 = por %p58, %p59
    %s62 = sadd.s32 %s61, 1
    %p65 = scmp.eq.s32.totalorder %s15, 3
    %p66 = scmp.ne.s32.totalorder %s61, %s63
    %p67 = scmp.eq.s32.totalorder %s15, 0
    %p68 = por %p66, %p67
    %p69 = scmp.ne.s32.totalorder %s61, %s63
    %p70 = scmp.eq.s32.totalorder %s20, 3
    %p71 = por %p69, %p70
    %p72 = scmp.ne.s32.totalorder %s63, %s64
    %p73 = scmp.eq.s32.totalorder %s20, 0
    %p74 = por %p72, %p73
    %p75 = scmp.ne.s32.totalorder %s63, %s64
    %p76 = scmp.eq.s32.totalorder %s21, 3
    %p77 = por %p75, %p76
    %p79 = scmp.ne.s32.totalorder %s64, %s78
    %p80 = scmp.eq.s32.totalorder %s21, 0
    %p81 = por %p79, %p80
    %s83 = sadd.s32 %s82, 1
    %p86 = scmp.eq.s32.totalorder %s15, 3
    %p87 = scmp.ne.s32.totalorder %s82, %s84
    %p88 = scmp.eq.s32.totalorder %s15, 0
    %p89 = por %p87, %p88
    %p90 = scmp.ne.s32.totalorder %s82, %s84
    %p91 = scmp.eq.s32.totalorder %s20, 3
    %p92 = por %p90, %p91
    %p93 = scmp.ne.s32.totalorder %s84, %s85
    %p94 = scmp.eq.s32.totalorder %s20, 0
    %p95 = por %p93, %p94
    %p96 = scmp.ne.s32.totalorder %s84, %s85
    %p97 = scmp.eq.s32.totalorder %s21, 3
    %p98 = por %p96, %p97
    %p100 = scmp.ne.s32.totalorder %s85, %s99
    %p101 = scmp.eq.s32.totalorder %s21, 0
    %p102 = por %p100, %p101
    %s104 = sadd.s32 %s103, 1
    %p107 = scmp.eq.s32.totalorder %s15, 3
    %p108 = scmp.ne.s32.totalorder %s103, %s105
    %p109 = scmp.eq.s32.totalorder %s15, 0
    %p110 = por %p108, %p109
    %p111 = scmp.ne.s32.totalorder %s103, %s105
    %p112 = scmp.eq.s32.totalorder %s20, 3
    %p113 = por %p111, %p112
    %p114 = scmp.ne.s32.totalorder %s105, %s106
    %p115 = scmp.eq.s32.totalorder %s20, 0
    %p116 = por %p114, %p115
    %p117 = scmp.ne.s32.totalorder %s105, %s106
    %p118 = scmp.eq.s32.totalorder %s21, 3
    %p119 = por %p117, %p118
    %p121 = scmp.ne.s32.totalorder %s106, %s120
    %p122 = scmp.eq.s32.totalorder %s21, 0
    %p123 = por %p121, %p122
    %s125 = sadd.s32 %s124, 1
    %p128 = scmp.eq.s32.totalorder %s15, 3
    %p129 = scmp.ne.s32.totalorder %s124, %s126
    %p130 = scmp.eq.s32.totalorder %s15, 0
    %p131 = por %p129, %p130
    %p132 = scmp.ne.s32.totalorder %s124, %s126
    %p133 = scmp.eq.s32.totalorder %s20, 3
    %p134 = por %p132, %p133
    %p135 = scmp.ne.s32.totalorder %s126, %s127
    %p136 = scmp.eq.s32.totalorder %s20, 0
    %p137 = por %p135, %p136
    %p138 = scmp.ne.s32.totalorder %s126, %s127
    %p139 = scmp.eq.s32.totalorder %s21, 3
    %p140 = por %p138, %p139
    %p142 = scmp.ne.s32.totalorder %s127, %s141
    %p143 = scmp.eq.s32.totalorder %s21, 0
    %p144 = por %p142, %p143
    %s146 = sadd.s32 %s145, 1
    %p149 = scmp.eq.s32.totalorder %s15, 3
    %p150 = scmp.ne.s32.totalorder %s145, %s147
    %p151 = scmp.eq.s32.totalorder %s15, 0
    %p152 = por %p150, %p151
    %p153 = scmp.ne.s32.totalorder %s145, %s147
    %p154 = scmp.eq.s32.totalorder %s20, 3
    %p155 = por %p153, %p154
    %p156 = scmp.ne.s32.totalorder %s147, %s148
    %p157 = scmp.eq.s32.totalorder %s20, 0
    %p158 = por %p156, %p157
    %p159 = scmp.ne.s32.totalorder %s147, %s148
    %p160 = scmp.eq.s32.totalorder %s21, 3
    %p161 = por %p159, %p160
    %p163 = scmp.ne.s32.totalorder %s148, %s162
    %p164 = scmp.eq.s32.totalorder %s21, 0
    %p165 = por %p163, %p164
    %s167 = sadd.s32 %s166, 1
    %p170 = scmp.eq.s32.totalorder %s15, 3
    %p171 = scmp.ne.s32.totalorder %s166, %s168
    %p172 = scmp.eq.s32.totalorder %s15, 0
    %p173 = por %p171, %p172
    %p174 = scmp.ne.s32.totalorder %s166, %s168
    %p175 = scmp.eq.s32.totalorder %s20, 3
    %p176 = por %p174, %p175
    %p177 = scmp.ne.s32.totalorder %s168, %s169
    %p178 = scmp.eq.s32.totalorder %s20, 0
    %p179 = por %p177, %p178
    %p180 = scmp.ne.s32.totalorder %s168, %s169
    %p181 = scmp.eq.s32.totalorder %s21, 3
    %p182 = por %p180, %p181
    %p184 = scmp.ne.s32.totalorder %s169, %s183
    %p185 = scmp.eq.s32.totalorder %s21, 0
    %p186 = por %p184, %p185
    %s188 = sadd.s32 %s187, 1
    %p191 = scmp.eq.s32.totalorder %s15, 3
    %p192 = scmp.ne.s32.totalorder %s187, %s189
    %p193 = scmp.eq.s32.totalorder %s15, 0
    %p194 = por %p192, %p193
    %p195 = scmp.ne.s32.totalorder %s187, %s189
    %p196 = scmp.eq.s32.totalorder %s20, 3
    %p197 = por %p195, %p196
    %p198 = scmp.ne.s32.totalorder %s189, %s190
    %p199 = scmp.eq.s32.totalorder %s20, 0
    %p200 = por %p198, %p199
    %p201 = scmp.ne.s32.totalorder %s189, %s190
    %p202 = scmp.eq.s32.totalorder %s21, 3
    %p203 = por %p201, %p202
    %p205 = scmp.ne.s32.totalorder %s190, %s204
    %p206 = scmp.eq.s32.totalorder %s21, 0
    %p207 = por %p205, %p206
    %s208 = ssub.s32 %s22, %s34
    %s209 = ssub.s32 %s23, %s30
    %s210 = sor.u32 %s208, %s209
    %p211 = scmp.eq.s32.totalorder %s210, 0
    %s213 = sadd.s32 %s212, 1
    %s214 = scalar_select %p211, %s212, %s213
    %p217 = pneg %p211
    %p218 = scmp.eq.s32.totalorder %s15, 3
    %p219 = por %p217, %p218
    %p220 = scmp.ne.s32.totalorder %s212, %s215
    %p221 = scmp.eq.s32.totalorder %s15, 0
    %p222 = por %p220, %p221
    %p223 = scmp.ne.s32.totalorder %s212, %s215
    %p224 = scmp.eq.s32.totalorder %s20, 3
    %p225 = por %p223, %p224
    %p226 = scmp.ne.s32.totalorder %s215, %s216
    %p227 = scmp.eq.s32.totalorder %s20, 0
    %p228 = por %p226, %p227
    %p229 = scmp.ne.s32.totalorder %s215, %s216
    %p230 = scmp.eq.s32.totalorder %s21, 3
    %p231 = por %p229, %p230
    %p233 = scmp.ne.s32.totalorder %s216, %s232
    %p234 = scmp.eq.s32.totalorder %s21, 0
    %p235 = por %p233, %p234
    %p236 = scmp.le.s32.totalorder 1, %s15
    %p237 = scmp.lt.s32.totalorder %s15, 5
    %p238 = pnand %p236, %p237
    %p239 = pneg %p238
    // Predicated region
    $region9: #{self_attention_block.1} parent=5 // pred_check
      _
    $region10: #{self_attention_block.1} parent=5 // pred_check_branch
      %241 = sbr.rel (%p238) target = $region12
    $region11: #{self_attention_block.1} parent=5 // pred_region
      %s242 = ssub.s32 %s15, 1
      // Predicated region
      $region13: #{self_attention_block.1} parent=11 // pred_check
        %p243 = pneg %p74
      $region14: #{self_attention_block.1} parent=11 // pred_check_branch
        %245 = sbr.rel (%p243) target = $region16
      $region15: #{self_attention_block.1} parent=11 // pred_region
        _
      $region16: #{self_attention_block.1} parent=11 // pred_fallthru
        _
      // Predicated region
      $region17: #{self_attention_block.1} parent=11 // pred_check
        %p246 = pneg %p95
      $region18: #{self_attention_block.1} parent=11 // pred_check_branch
        %248 = sbr.rel (%p246) target = $region20
      $region19: #{self_attention_block.1} parent=11 // pred_region
        _
      $region20: #{self_attention_block.1} parent=11 // pred_fallthru
        _
      // Predicated region
      $region21: #{self_attention_block.1} parent=11 // pred_check
        %p249 = pneg %p116
      $region22: #{self_attention_block.1} parent=11 // pred_check_branch
        %251 = sbr.rel (%p249) target = $region24
      $region23: #{self_attention_block.1} parent=11 // pred_region
        _
      $region24: #{self_attention_block.1} parent=11 // pred_fallthru
        _
      // Predicated region
      $region25: #{self_attention_block.1} parent=11 // pred_check
        %p252 = pneg %p137
      $region26: #{self_attention_block.1} parent=11 // pred_check_branch
        %254 = sbr.rel (%p252) target = $region28
      $region27: #{self_attention_block.1} parent=11 // pred_region
        _
      $region28: #{self_attention_block.1} parent=11 // pred_fallthru
        _
      // Predicated region
      $region29: #{self_attention_block.1} parent=11 // pred_check
        %p255 = pneg %p158
      $region30: #{self_attention_block.1} parent=11 // pred_check_branch
        %257 = sbr.rel (%p255) target = $region32
      $region31: #{self_attention_block.1} parent=11 // pred_region
        _
      $region32: #{self_attention_block.1} parent=11 // pred_fallthru
        _
      // Predicated region
      $region33: #{self_attention_block.1} parent=11 // pred_check
        %p258 = pneg %p179
      $region34: #{self_attention_block.1} parent=11 // pred_check_branch
        %260 = sbr.rel (%p258) target = $region36
      $region35: #{self_attention_block.1} parent=11 // pred_region
        _
      $region36: #{self_attention_block.1} parent=11 // pred_fallthru
        _
      // Predicated region
      $region37: #{self_attention_block.1} parent=11 // pred_check
        %p261 = pneg %p200
      $region38: #{self_attention_block.1} parent=11 // pred_check_branch
        %263 = sbr.rel (%p261) target = $region40
      $region39: #{self_attention_block.1} parent=11 // pred_region
        _
      $region40: #{self_attention_block.1} parent=11 // pred_fallthru
        _
    $region12: #{self_attention_block.1} parent=5 // pred_fallthru
      _
    %p264 = scmp.lt.s32.totalorder %s15, 4
    // Predicated region
    $region41: #{self_attention_block.1} parent=5 // pred_check
      %p265 = pneg %p264
    $region42: #{self_attention_block.1} parent=5 // pred_check_branch
      %267 = sbr.rel (%p265) target = $region44
    $region43: #{self_attention_block.1} parent=5 // pred_region
      // Predicated region
      $region45: #{self_attention_block.1} parent=43 // pred_check
        %p268 = pneg %p47
      $region46: #{self_attention_block.1} parent=43 // pred_check_branch
        %270 = sbr.rel (%p268) target = $region48
      $region47: #{self_attention_block.1} parent=43 // pred_region
        %p271 = scmp.lt.s32.totalorder %s22, 1
        %s272 = scalar_select %p271, %s22, 1
        %s273 = smul.addr %s272, 32
        %s274 = smul.addr %s273, 8
        %s275 = scalar_lea.vmem %s0, %s274
      $region48: #{self_attention_block.1} parent=43 // pred_fallthru
        _
    $region44: #{self_attention_block.1} parent=5 // pred_fallthru
      _
    %p276 = scmp.le.s32.totalorder 1, %s15
    %p277 = scmp.lt.s32.totalorder %s15, 5
    %p278 = pnand %p276, %p277
    %p279 = pneg %p278
    // Predicated region
    $region49: #{self_attention_block.1} parent=5 // pred_check
      _
    $region50: #{self_attention_block.1} parent=5 // pred_check_branch
      %281 = sbr.rel (%p278) target = $region52
    $region51: #{self_attention_block.1} parent=5 // pred_region
      %s282 = ssub.s32 %s15, 1
      %p283 = scmp.lt.s32.totalorder %s24, 1
      %s284 = scalar_select %p283, %s24, 1
      %s285 = smul.addr %s284, 32
      %s286 = smul.addr %s285, 8
      %s287 = scalar_lea.vmem %s0, %s286
      %p288 = pneg %p53
      %p289 = pneg %p50
      %p290 = pneg %p74
      %p291 = pneg %p71
      %p292 = pneg %p95
      %p293 = pneg %p92
      %p294 = pneg %p116
      %p295 = pneg %p113
      %p296 = pneg %p137
      %p297 = pneg %p134
      %p298 = pneg %p158
      %p299 = pneg %p155
      %p300 = pneg %p179
      %p301 = pneg %p176
      %p302 = pneg %p200
      %p303 = pneg %p197
      %p304 = pneg %p228
      %p305 = pneg %p225
      %s306 = smul.u32 16, %s25
      %p307 = scmp.lt.s32.totalorder %s24, 1
      %s308 = scalar_select %p307, %s24, 1
      %p309 = scmp.lt.s32.totalorder %s306, 31
      %s310 = scalar_select %p309, %s306, 31
      %s311 = smul.addr %s308, 32
      %s312 = sadd.s32 %s310, %s311
      %s313 = smul.addr %s312, 8
      %s314 = scalar_lea.vmem %s8, %s313
      %p315 = scmp.lt.s32.totalorder %s24, 1
      %s316 = scalar_select %p315, %s24, 1
      %s317 = smul.addr %s316, 32
      %s318 = smul.addr %s317, 8
      %s319 = scalar_lea.vmem %s0, %s318
      %s320 = smul.u32 16, %s25
      %p321 = scmp.lt.s32.totalorder %s24, 1
      %s322 = scalar_select %p321, %s24, 1
      %p323 = scmp.lt.s32.totalorder %s320, 31
      %s324 = scalar_select %p323, %s320, 31
      %s325 = smul.addr %s322, 32
      %s326 = sadd.s32 %s324, %s325
      %s327 = smul.addr %s326, 8
      %s328 = scalar_lea.vmem %s8, %s327
      %s329 = smul.u32 16, %s25
      %p331 = scmp.eq.s32.totalorder %s25, 0
      // Predicated region
      $region53: #{self_attention_block.1} parent=51 // pred_check
        %p332 = pneg %p331
      $region54: #{self_attention_block.1} parent=51 // pred_check_branch
        %334 = sbr.rel (%p332) target = $region56
      $region55: #{self_attention_block.1} parent=51 // pred_region
        %v335 = vld [vmem:[%s319] sm:$0xff]
        %v336 = vld [vmem:[%s319 + $0x8] sm:$0xff]
        %v337 = vld [vmem:[%s319 + $0x10] sm:$0xff]
        %v338 = vld [vmem:[%s319 + $0x18] sm:$0xff]
        %v339 = vld [vmem:[%s319 + $0x20] sm:$0xff]
        %v340 = vld [vmem:[%s319 + $0x28] sm:$0xff]
        %v341 = vld [vmem:[%s319 + $0x30] sm:$0xff]
        %v342 = vld [vmem:[%s319 + $0x38] sm:$0xff]
        %v343 = vld [vmem:[%s319 + $0x40] sm:$0xff]
        %v344 = vld [vmem:[%s319 + $0x48] sm:$0xff]
        %v345 = vld [vmem:[%s319 + $0x50] sm:$0xff]
        %v346 = vld [vmem:[%s319 + $0x58] sm:$0xff]
        %v347 = vld [vmem:[%s319 + $0x60] sm:$0xff]
        %v348 = vld [vmem:[%s319 + $0x68] sm:$0xff]
        %v349 = vld [vmem:[%s319 + $0x70] sm:$0xff]
        %v350 = vld [vmem:[%s319 + $0x78] sm:$0xff]
        %v351 = vld [vmem:[%s319 + $0x80] sm:$0xff]
        %v352 = vld [vmem:[%s319 + $0x88] sm:$0xff]
        %v353 = vld [vmem:[%s319 + $0x90] sm:$0xff]
        %v354 = vld [vmem:[%s319 + $0x98] sm:$0xff]
        %v355 = vld [vmem:[%s319 + $0xa0] sm:$0xff]
        %v356 = vld [vmem:[%s319 + $0xa8] sm:$0xff]
        %v357 = vld [vmem:[%s319 + $0xb0] sm:$0xff]
        %v358 = vld [vmem:[%s319 + $0xb8] sm:$0xff]
        %v359 = vld [vmem:[%s319 + $0xc0] sm:$0xff]
        %v360 = vld [vmem:[%s319 + $0xc8] sm:$0xff]
        %v361 = vld [vmem:[%s319 + $0xd0] sm:$0xff]
        %v362 = vld [vmem:[%s319 + $0xd8] sm:$0xff]
        %v363 = vld [vmem:[%s319 + $0xe0] sm:$0xff]
        %v364 = vld [vmem:[%s319 + $0xe8] sm:$0xff]
        %v365 = vld [vmem:[%s319 + $0xf0] sm:$0xff]
        %v366 = vld [vmem:[%s319 + $0xf8] sm:$0xff]
        %v367 = vpack.c.bf16 %v336, %v335
        %v368 = vpack.c.bf16 %v338, %v337
        %v369 = vpack.c.bf16 %v340, %v339
        %v370 = vpack.c.bf16 %v342, %v341
        %v371 = vpack.c.bf16 %v344, %v343
        %v372 = vpack.c.bf16 %v346, %v345
        %v373 = vpack.c.bf16 %v348, %v347
        %v374 = vpack.c.bf16 %v350, %v349
        %v375 = vpack.c.bf16 %v352, %v351
        %v376 = vpack.c.bf16 %v354, %v353
        %v377 = vpack.c.bf16 %v356, %v355
        %v378 = vpack.c.bf16 %v358, %v357
        %v379 = vpack.c.bf16 %v360, %v359
        %v380 = vpack.c.bf16 %v362, %v361
        %v381 = vpack.c.bf16 %v364, %v363
        %v382 = vpack.c.bf16 %v366, %v365
        %v383 = vld [vmem:[%s3] sm:$0xf]
        %v384 = vld [vmem:[%s3 + $0x4] sm:$0xf]
        %v385 = vld [vmem:[%s4] sm:$0xff]
        %v386 = vld [vmem:[%s4 + $0x8] sm:$0xff]
        %388 = vset.pattern.permute.xlu0 0
        %389 = vperm.xlu0 %388, %v385
        %v390 = vpop.permute.xlu0 %389
        %393 = vset.pattern.permute.xlu0 0
        %394 = vperm.xlu0 %393, %v386
        %v395 = vpop.permute.xlu0 %394
        %v399 = vunpack.c.l.b16 %v383
        %v400 = vunpack.c.l.b16 %v384
        %v401 = vpack.c.b16 %v400, %v399
        %403 = vmatprep.subr.bf16.mxu0 0
        %404 = vmatpush1.bf16.xpose.msra.mxu0 %v367
        %405 = vmatprep.subr.bf16.mxu0 0
        %406 = vmatpush1.bf16.xpose.msra.mxu0 %v368
        %407 = vmatprep.subr.bf16.mxu0 0
        %408 = vmatpush1.bf16.xpose.msra.mxu0 %v369
        %409 = vmatprep.subr.bf16.mxu0 0
        %410 = vmatpush1.bf16.xpose.msra.mxu0 %v370
        %411 = vmatprep.subr.bf16.mxu0 0
        %412 = vmatpush1.bf16.xpose.msra.mxu0 %v371
        %413 = vmatprep.subr.bf16.mxu0 0
        %414 = vmatpush1.bf16.xpose.msra.mxu0 %v372
        %415 = vmatprep.subr.bf16.mxu0 0
        %416 = vmatpush1.bf16.xpose.msra.mxu0 %v373
        %417 = vmatprep.subr.bf16.mxu0 0
        %418 = vmatpush1.bf16.xpose.msra.mxu0 %v374
        %419 = vmatprep.subr.bf16.mxu0 0
        %420 = vmatpush1.bf16.xpose.msra.mxu0 %v375
        %421 = vmatprep.subr.bf16.mxu0 0
        %422 = vmatpush1.bf16.xpose.msra.mxu0 %v376
        %423 = vmatprep.subr.bf16.mxu0 0
        %424 = vmatpush1.bf16.xpose.msra.mxu0 %v377
        %425 = vmatprep.subr.bf16.mxu0 0
        %426 = vmatpush1.bf16.xpose.msra.mxu0 %v378
        %427 = vmatprep.subr.bf16.mxu0 0
        %428 = vmatpush1.bf16.xpose.msra.mxu0 %v379
        %429 = vmatprep.subr.bf16.mxu0 0
        %430 = vmatpush1.bf16.xpose.msra.mxu0 %v380
        %431 = vmatprep.subr.bf16.mxu0 0
        %432 = vmatpush1.bf16.xpose.msra.mxu0 %v381
        %433 = vmatprep.subr.bf16.mxu0 0
        %434 = vmatpush1.bf16.xpose.msra.mxu0 %v382
        %435 = vmatprep.mubr.bf16.mxu0 0
        %436 = vmatmul.mubr.bf16.gmra.mrb[0].mxu0 %v401
        %v437 = vpop.f32.mrb[0].mxu0
        %v438 = vadd.f32 %v390, %v437
        %v439 = vpop.f32.mrb[0].mxu0
        %v440 = vadd.f32 %v390, %v439
        %v441 = vpop.f32.mrb[0].mxu0
        %v442 = vadd.f32 %v395, %v441
        %v443 = vpop.f32.mrb[0].mxu0
        %v444 = vadd.f32 %v395, %v443
        %445 = vdwg.mxu0
        %v446 = vpack.c.bf16 %v442, %v438
        %v447 = vpack.c.bf16 %v444, %v440
        %448 = vst [vmem:[#allocation2] sm:$0xff] %v446
        %449 = vst [vmem:[#allocation2 + $0x8] sm:$0xff] %v447
        %v450 = vld [vmem:[%s5] sm:$0xf]
        %v451 = vld [vmem:[%s5 + $0x4] sm:$0xf]
        %v452 = vld [vmem:[%s5 + $0x8] sm:$0xf]
        %v453 = vld [vmem:[%s5 + $0xc] sm:$0xf]
        %v454 = vld [vmem:[%s5 + $0x10] sm:$0xf]
        %v455 = vld [vmem:[%s5 + $0x14] sm:$0xf]
        %v456 = vld [vmem:[%s5 + $0x18] sm:$0xf]
        %v457 = vld [vmem:[%s5 + $0x1c] sm:$0xf]
        %v458 = vld [vmem:[%s5 + $0x20] sm:$0xf]
        %v459 = vld [vmem:[%s5 + $0x24] sm:$0xf]
        %v460 = vld [vmem:[%s5 + $0x28] sm:$0xf]
        %v461 = vld [vmem:[%s5 + $0x2c] sm:$0xf]
        %v462 = vld [vmem:[%s5 + $0x30] sm:$0xf]
        %v463 = vld [vmem:[%s5 + $0x34] sm:$0xf]
        %v464 = vld [vmem:[%s5 + $0x38] sm:$0xf]
        %v465 = vld [vmem:[%s5 + $0x3c] sm:$0xf]
        %v466 = vld [vmem:[%s6] sm:$0x1]
        %v468 = vlaneseq
        %v469 = vshrl.u32 %v468, 7
        %v470 = vsub.s32 0, %v469
        %v471 = vrot.slane %v466, %v470
        %v489 = vunpack.c.l.b16 %v450
        %v490 = vunpack.c.l.b16 %v451
        %v491 = vunpack.c.l.b16 %v452
        %v492 = vunpack.c.l.b16 %v453
        %v493 = vunpack.c.l.b16 %v454
        %v494 = vunpack.c.l.b16 %v455
        %v495 = vunpack.c.l.b16 %v456
        %v496 = vunpack.c.l.b16 %v457
        %v497 = vunpack.c.l.b16 %v458
        %v498 = vunpack.c.l.b16 %v459
        %v499 = vunpack.c.l.b16 %v460
        %v500 = vunpack.c.l.b16 %v461
        %v501 = vunpack.c.l.b16 %v462
        %v502 = vunpack.c.l.b16 %v463
        %v503 = vunpack.c.l.b16 %v464
        %v504 = vunpack.c.l.b16 %v465
        %v505 = vpack.c.b16 %v490, %v489
        %v506 = vpack.c.b16 %v492, %v491
        %v507 = vpack.c.b16 %v494, %v493
        %v508 = vpack.c.b16 %v496, %v495
        %v509 = vpack.c.b16 %v498, %v497
        %v510 = vpack.c.b16 %v500, %v499
        %v511 = vpack.c.b16 %v502, %v501
        %v512 = vpack.c.b16 %v504, %v503
        %521 = vmatprep.subr.bf16.mxu0 0
        %522 = vmatpush1.bf16.msra.mxu0 %v505
        %523 = vmatprep.subr.bf16.mxu0 0
        %524 = vmatpush1.bf16.msra.mxu0 %v506
        %525 = vmatprep.subr.bf16.mxu0 0
        %526 = vmatpush1.bf16.msra.mxu0 %v507
        %527 = vmatprep.subr.bf16.mxu0 0
        %528 = vmatpush1.bf16.msra.mxu0 %v508
        %529 = vmatprep.subr.bf16.mxu0 0
        %530 = vmatpush1.bf16.msra.mxu0 %v509
        %531 = vmatprep.subr.bf16.mxu0 0
        %532 = vmatpush1.bf16.msra.mxu0 %v510
        %533 = vmatprep.subr.bf16.mxu0 0
        %534 = vmatpush1.bf16.msra.mxu0 %v511
        %535 = vmatprep.subr.bf16.mxu0 0
        %536 = vmatpush1.bf16.msra.mxu0 %v512
        %537 = vmatprep.subr.bf16.mxu0 0
        %538 = vmatpush1.bf16.msra.mxu0 0
        %539 = vmatprep.subr.bf16.mxu0 0
        %540 = vmatpush1.bf16.msra.mxu0 0
        %541 = vmatprep.subr.bf16.mxu0 0
        %542 = vmatpush1.bf16.msra.mxu0 0
        %543 = vmatprep.subr.bf16.mxu0 0
        %544 = vmatpush1.bf16.msra.mxu0 0
        %545 = vmatprep.subr.bf16.mxu0 0
        %546 = vmatpush1.bf16.msra.mxu0 0
        %547 = vmatprep.subr.bf16.mxu0 0
        %548 = vmatpush1.bf16.msra.mxu0 0
        %549 = vmatprep.subr.bf16.mxu0 0
        %550 = vmatpush1.bf16.msra.mxu0 0
        %551 = vmatprep.subr.bf16.mxu0 0
        %552 = vmatpush1.bf16.msra.mxu0 0
        %553 = vmatprep.mubr.bf16.mxu0 0
        %554 = vmatmul.mubr.bf16.gmra.mrb[0].mxu0 %v367
        %v555 = vpop.f32.mrb[0].mxu0
        %v556 = vadd.f32 %v471, %v555
        %v557 = vpop.f32.mrb[0].mxu0
        %v558 = vpop.f32.mrb[0].mxu0
        %v559 = vadd.f32 %v471, %v558
        %v560 = vpop.f32.mrb[0].mxu0
        %561 = vmatprep.mubr.bf16.mxu0 0
        %562 = vmatmul.mubr.bf16.gmra.mrb[0].mxu0 %v368
        %v563 = vpop.f32.mrb[0].mxu0
        %v564 = vadd.f32 %v471, %v563
        %v565 = vpop.f32.mrb[0].mxu0
        %v566 = vpop.f32.mrb[0].mxu0
        %v567 = vadd.f32 %v471, %v566
        %v568 = vpop.f32.mrb[0].mxu0
        %569 = vmatprep.mubr.bf16.mxu0 0
        %570 = vmatmul.mubr.bf16.gmra.mrb[0].mxu0 %v369
        %v571 = vpop.f32.mrb[0].mxu0
        %v572 = vadd.f32 %v471, %v571
        %v573 = vpop.f32.mrb[0].mxu0
        %v574 = vpop.f32.mrb[0].mxu0
        %v575 = vadd.f32 %v471, %v574
        %v576 = vpop.f32.mrb[0].mxu0
        %577 = vmatprep.mubr.bf16.mxu0 0
        %578 = vmatmul.mubr.bf16.gmra.mrb[0].mxu0 %v370
        %v579 = vpop.f32.mrb[0].mxu0
        %v580 = vadd.f32 %v471, %v579
        %v581 = vpop.f32.mrb[0].mxu0
        %v582 = vpop.f32.mrb[0].mxu0
        %v583 = vadd.f32 %v471, %v582
        %v584 = vpop.f32.mrb[0].mxu0
        %585 = vmatprep.mubr.bf16.mxu0 0
        %586 = vmatmul.mubr.bf16.gmra.mrb[0].mxu0 %v371
        %v587 = vpop.f32.mrb[0].mxu0
        %v588 = vadd.f32 %v471, %v587
        %v589 = vpop.f32.mrb[0].mxu0
        %v590 = vpop.f32.mrb[0].mxu0
        %v591 = vadd.f32 %v471, %v590
        %v592 = vpop.f32.mrb[0].mxu0
        %593 = vmatprep.mubr.bf16.mxu0 0
        %594 = vmatmul.mubr.bf16.gmra.mrb[0].mxu0 %v372
        %v595 = vpop.f32.mrb[0].mxu0
        %v596 = vadd.f32 %v471, %v595
        %v597 = vpop.f32.mrb[0].mxu0
        %v598 = vpop.f32.mrb[0].mxu0
        %v599 = vadd.f32 %v471, %v598
        %v600 = vpop.f32.mrb[0].mxu0
        %601 = vmatprep.mubr.bf16.mxu0 0
        %602 = vmatmul.mubr.bf16.gmra.mrb[0].mxu0 %v373
        %v603 = vpop.f32.mrb[0].mxu0
        %v604 = vadd.f32 %v471, %v603
        %v605 = vpop.f32.mrb[0].mxu0
        %v606 = vpop.f32.mrb[0].mxu0
        %v607 = vadd.f32 %v471, %v606
        %v608 = vpop.f32.mrb[0].mxu0
        %609 = vmatprep.mubr.bf16.mxu0 0
        %610 = vmatmul.mubr.bf16.gmra.mrb[0].mxu0 %v374
        %v611 = vpop.f32.mrb[0].mxu0
        %v612 = vadd.f32 %v471, %v611
        %v613 = vpop.f32.mrb[0].mxu0
        %v614 = vpop.f32.mrb[0].mxu0
        %v615 = vadd.f32 %v471, %v614
        %v616 = vpop.f32.mrb[0].mxu0
        %617 = vmatprep.mubr.bf16.mxu0 0
        %618 = vmatmul.mubr.bf16.gmra.mrb[0].mxu0 %v375
        %v619 = vpop.f32.mrb[0].mxu0
        %v620 = vadd.f32 %v471, %v619
        %v621 = vpop.f32.mrb[0].mxu0
        %v622 = vpop.f32.mrb[0].mxu0
        %v623 = vadd.f32 %v471, %v622
        %v624 = vpop.f32.mrb[0].mxu0
        %625 = vmatprep.mubr.bf16.mxu0 0
        %626 = vmatmul.mubr.bf16.gmra.mrb[0].mxu0 %v376
        %v627 = vpop.f32.mrb[0].mxu0
        %v628 = vadd.f32 %v471, %v627
        %v629 = vpop.f32.mrb[0].mxu0
        %v630 = vpop.f32.mrb[0].mxu0
        %v631 = vadd.f32 %v471, %v630
        %v632 = vpop.f32.mrb[0].mxu0
        %633 = vmatprep.mubr.bf16.mxu0 0
        %634 = vmatmul.mubr.bf16.gmra.mrb[0].mxu0 %v377
        %v635 = vpop.f32.mrb[0].mxu0
        %v636 = vadd.f32 %v471, %v635
        %v637 = vpop.f32.mrb[0].mxu0
        %v638 = vpop.f32.mrb[0].mxu0
        %v639 = vadd.f32 %v471, %v638
        %v640 = vpop.f32.mrb[0].mxu0
        %641 = vmatprep.mubr.bf16.mxu0 0
        %642 = vmatmul.mubr.bf16.gmra.mrb[0].mxu0 %v378
        %v643 = vpop.f32.mrb[0].mxu0
        %v644 = vadd.f32 %v471, %v643
        %v645 = vpop.f32.mrb[0].mxu0
        %v646 = vpop.f32.mrb[0].mxu0
        %v647 = vadd.f32 %v471, %v646
        %v648 = vpop.f32.mrb[0].mxu0
        %649 = vmatprep.mubr.bf16.mxu0 0
        %650 = vmatmul.mubr.bf16.gmra.mrb[0].mxu0 %v379
        %v651 = vpop.f32.mrb[0].mxu0
        %v652 = vadd.f32 %v471, %v651
        %v653 = vpop.f32.mrb[0].mxu0
        %v654 = vpop.f32.mrb[0].mxu0
        %v655 = vadd.f32 %v471, %v654
        %v656 = vpop.f32.mrb[0].mxu0
        %657 = vmatprep.mubr.bf16.mxu0 0
        %658 = vmatmul.mubr.bf16.gmra.mrb[0].mxu0 %v380
        %v659 = vpop.f32.mrb[0].mxu0
        %v660 = vadd.f32 %v471, %v659
        %v661 = vpop.f32.mrb[0].mxu0
        %v662 = vpop.f32.mrb[0].mxu0
        %v663 = vadd.f32 %v471, %v662
        %v664 = vpop.f32.mrb[0].mxu0
        %665 = vmatprep.mubr.bf16.mxu0 0
        %666 = vmatmul.mubr.bf16.gmra.mrb[0].mxu0 %v381
        %v667 = vpop.f32.mrb[0].mxu0
        %v668 = vadd.f32 %v471, %v667
        %v669 = vpop.f32.mrb[0].mxu0
        %v670 = vpop.f32.mrb[0].mxu0
        %v671 = vadd.f32 %v471, %v670
        %v672 = vpop.f32.mrb[0].mxu0
        %673 = vmatprep.mubr.bf16.mxu0 0
        %674 = vmatmul.mubr.bf16.gmra.mrb[0].mxu0 %v382
        %v675 = vpop.f32.mrb[0].mxu0
        %v676 = vadd.f32 %v471, %v675
        %v677 = vpop.f32.mrb[0].mxu0
        %v678 = vpop.f32.mrb[0].mxu0
        %v679 = vadd.f32 %v471, %v678
        %v680 = vpop.f32.mrb[0].mxu0
        %681 = vdwg.mxu0
        %v682 = vpack.c.bf16 %v559, %v556
        %v683 = vpack.c.bf16 %v567, %v564
        %v684 = vpack.c.bf16 %v575, %v572
        %v685 = vpack.c.bf16 %v583, %v580
        %v686 = vpack.c.bf16 %v591, %v588
        %v687 = vpack.c.bf16 %v599, %v596
        %v688 = vpack.c.bf16 %v607, %v604
        %v689 = vpack.c.bf16 %v615, %v612
        %v690 = vpack.c.bf16 %v623, %v620
        %v691 = vpack.c.bf16 %v631, %v628
        %v692 = vpack.c.bf16 %v639, %v636
        %v693 = vpack.c.bf16 %v647, %v644
        %v694 = vpack.c.bf16 %v655, %v652
        %v695 = vpack.c.bf16 %v663, %v660
        %v696 = vpack.c.bf16 %v671, %v668
        %v697 = vpack.c.bf16 %v679, %v676
        %698 = vst [vmem:[#allocation3] sm:$0xff] %v682
        %699 = vst [vmem:[#allocation3 + $0x8] sm:$0xff] %v683
        %700 = vst [vmem:[#allocation3 + $0x10] sm:$0xff] %v684
        %701 = vst [vmem:[#allocation3 + $0x18] sm:$0xff] %v685
        %702 = vst [vmem:[#allocation3 + $0x20] sm:$0xff] %v686
        %703 = vst [vmem:[#allocation3 + $0x28] sm:$0xff] %v687
        %704 = vst [vmem:[#allocation3 + $0x30] sm:$0xff] %v688
        %705 = vst [vmem:[#allocation3 + $0x38] sm:$0xff] %v689
        %706 = vst [vmem:[#allocation3 + $0x40] sm:$0xff] %v690
        %707 = vst [vmem:[#allocation3 + $0x48] sm:$0xff] %v691
        %708 = vst [vmem:[#allocation3 + $0x50] sm:$0xff] %v692
        %709 = vst [vmem:[#allocation3 + $0x58] sm:$0xff] %v693
        %710 = vst [vmem:[#allocation3 + $0x60] sm:$0xff] %v694
        %711 = vst [vmem:[#allocation3 + $0x68] sm:$0xff] %v695
        %712 = vst [vmem:[#allocation3 + $0x70] sm:$0xff] %v696
        %713 = vst [vmem:[#allocation3 + $0x78] sm:$0xff] %v697
      $region56: #{self_attention_block.1} parent=51 // pred_fallthru
        _
      %s714 = smul.u32 %s25, 128
      %s715 = scalar_lea.vmem %s319, %s714
      %v716 = vld [vmem:[%s715] sm:$0xff]
      %v717 = vld [vmem:[%s715 + $0x8] sm:$0xff]
      %v718 = vld [vmem:[%s715 + $0x10] sm:$0xff]
      %v719 = vld [vmem:[%s715 + $0x18] sm:$0xff]
      %v720 = vld [vmem:[%s715 + $0x20] sm:$0xff]
      %v721 = vld [vmem:[%s715 + $0x28] sm:$0xff]
      %v722 = vld [vmem:[%s715 + $0x30] sm:$0xff]
      %v723 = vld [vmem:[%s715 + $0x38] sm:$0xff]
      %v724 = vld [vmem:[%s715 + $0x40] sm:$0xff]
      %v725 = vld [vmem:[%s715 + $0x48] sm:$0xff]
      %v726 = vld [vmem:[%s715 + $0x50] sm:$0xff]
      %v727 = vld [vmem:[%s715 + $0x58] sm:$0xff]
      %v728 = vld [vmem:[%s715 + $0x60] sm:$0xff]
      %v729 = vld [vmem:[%s715 + $0x68] sm:$0xff]
      %v730 = vld [vmem:[%s715 + $0x70] sm:$0xff]
      %v731 = vld [vmem:[%s715 + $0x78] sm:$0xff]
      %v732 = vpack.c.bf16 %v717, %v716
      %v733 = vpack.c.bf16 %v719, %v718
      %v734 = vpack.c.bf16 %v721, %v720
      %v735 = vpack.c.bf16 %v723, %v722
      %v736 = vpack.c.bf16 %v725, %v724
      %v737 = vpack.c.bf16 %v727, %v726
      %v738 = vpack.c.bf16 %v729, %v728
      %v739 = vpack.c.bf16 %v731, %v730
      %v740 = vld [vmem:[%s1] sm:$0xf]
      %v741 = vld [vmem:[%s1 + $0x4] sm:$0xf]
      %v742 = vld [vmem:[%s1 + $0x8] sm:$0xf]
      %v743 = vld [vmem:[%s1 + $0xc] sm:$0xf]
      %v744 = vld [vmem:[%s1 + $0x10] sm:$0xf]
      %v745 = vld [vmem:[%s1 + $0x14] sm:$0xf]
      %v746 = vld [vmem:[%s1 + $0x18] sm:$0xf]
      %v747 = vld [vmem:[%s1 + $0x1c] sm:$0xf]
      %v748 = vld [vmem:[%s1 + $0x20] sm:$0xf]
      %v749 = vld [vmem:[%s1 + $0x24] sm:$0xf]
      %v750 = vld [vmem:[%s1 + $0x28] sm:$0xf]
      %v751 = vld [vmem:[%s1 + $0x2c] sm:$0xf]
      %v752 = vld [vmem:[%s1 + $0x30] sm:$0xf]
      %v753 = vld [vmem:[%s1 + $0x34] sm:$0xf]
      %v754 = vld [vmem:[%s1 + $0x38] sm:$0xf]
      %v755 = vld [vmem:[%s1 + $0x3c] sm:$0xf]
      %v756 = vld [vmem:[%s2] sm:$0x1]
      %v758 = vlaneseq
      %v759 = vshrl.u32 %v758, 7
      %v760 = vsub.s32 0, %v759
      %v761 = vrot.slane %v756, %v760
      %v779 = vunpack.c.l.b16 %v740
      %v780 = vunpack.c.l.b16 %v741
      %v781 = vunpack.c.l.b16 %v742
      %v782 = vunpack.c.l.b16 %v743
      %v783 = vunpack.c.l.b16 %v744
      %v784 = vunpack.c.l.b16 %v745
      %v785 = vunpack.c.l.b16 %v746
      %v786 = vunpack.c.l.b16 %v747
      %v787 = vunpack.c.l.b16 %v748
      %v788 = vunpack.c.l.b16 %v749
      %v789 = vunpack.c.l.b16 %v750
      %v790 = vunpack.c.l.b16 %v751
      %v791 = vunpack.c.l.b16 %v752
      %v792 = vunpack.c.l.b16 %v753
      %v793 = vunpack.c.l.b16 %v754
      %v794 = vunpack.c.l.b16 %v755
      %v795 = vpack.c.b16 %v780, %v779
      %v796 = vpack.c.b16 %v782, %v781
      %v797 = vpack.c.b16 %v784, %v783
      %v798 = vpack.c.b16 %v786, %v785
      %v799 = vpack.c.b16 %v788, %v787
      %v800 = vpack.c.b16 %v790, %v789
      %v801 = vpack.c.b16 %v792, %v791
      %v802 = vpack.c.b16 %v794, %v793
      %811 = vmatprep.subr.bf16.mxu0 0
      %812 = vmatpush1.bf16.msra.mxu0 %v795
      %813 = vmatprep.subr.bf16.mxu0 0
      %814 = vmatpush1.bf16.msra.mxu0 %v796
      %815 = vmatprep.subr.bf16.mxu0 0
      %816 = vmatpush1.bf16.msra.mxu0 %v797
      %817 = vmatprep.subr.bf16.mxu0 0
      %818 = vmatpush1.bf16.msra.mxu0 %v798
      %819 = vmatprep.subr.bf16.mxu0 0
      %820 = vmatpush1.bf16.msra.mxu0 %v799
      %821 = vmatprep.subr.bf16.mxu0 0
      %822 = vmatpush1.bf16.msra.mxu0 %v800
      %823 = vmatprep.subr.bf16.mxu0 0
      %824 = vmatpush1.bf16.msra.mxu0 %v801
      %825 = vmatprep.subr.bf16.mxu0 0
      %826 = vmatpush1.bf16.msra.mxu0 %v802
      %827 = vmatprep.subr.bf16.mxu0 0
      %828 = vmatpush1.bf16.msra.mxu0 0
      %829 = vmatprep.subr.bf16.mxu0 0
      %830 = vmatpush1.bf16.msra.mxu0 0
      %831 = vmatprep.subr.bf16.mxu0 0
      %832 = vmatpush1.bf16.msra.mxu0 0
      %833 = vmatprep.subr.bf16.mxu0 0
      %834 = vmatpush1.bf16.msra.mxu0 0
      %835 = vmatprep.subr.bf16.mxu0 0
      %836 = vmatpush1.bf16.msra.mxu0 0
      %837 = vmatprep.subr.bf16.mxu0 0
      %838 = vmatpush1.bf16.msra.mxu0 0
      %839 = vmatprep.subr.bf16.mxu0 0
      %840 = vmatpush1.bf16.msra.mxu0 0
      %841 = vmatprep.subr.bf16.mxu0 0
      %842 = vmatpush1.bf16.msra.mxu0 0
      %843 = vmatprep.mubr.bf16.mxu0 0
      %844 = vmatmul.mubr.bf16.gmra.mrb[0].mxu0 %v732
      %v845 = vpop.f32.mrb[0].mxu0
      %v846 = vadd.f32 %v761, %v845
      %v847 = vpop.f32.mrb[0].mxu0
      %v848 = vpop.f32.mrb[0].mxu0
      %v849 = vadd.f32 %v761, %v848
      %v850 = vpop.f32.mrb[0].mxu0
      %851 = vmatprep.mubr.bf16.mxu0 0
      %852 = vmatmul.mubr.bf16.gmra.mrb[0].mxu0 %v733
      %v853 = vpop.f32.mrb[0].mxu0
      %v854 = vadd.f32 %v761, %v853
      %v855 = vpop.f32.mrb[0].mxu0
      %v856 = vpop.f32.mrb[0].mxu0
      %v857 = vadd.f32 %v761, %v856
      %v858 = vpop.f32.mrb[0].mxu0
      %859 = vmatprep.mubr.bf16.mxu0 0
      %860 = vmatmul.mubr.bf16.gmra.mrb[0].mxu0 %v734
      %v861 = vpop.f32.mrb[0].mxu0
      %v862 = vadd.f32 %v761, %v861
      %v863 = vpop.f32.mrb[0].mxu0
      %v864 = vpop.f32.mrb[0].mxu0
      %v865 = vadd.f32 %v761, %v864
      %v866 = vpop.f32.mrb[0].mxu0
      %867 = vmatprep.mubr.bf16.mxu0 0
      %868 = vmatmul.mubr.bf16.gmra.mrb[0].mxu0 %v735
      %v869 = vpop.f32.mrb[0].mxu0
      %v870 = vadd.f32 %v761, %v869
      %v871 = vpop.f32.mrb[0].mxu0
      %v872 = vpop.f32.mrb[0].mxu0
      %v873 = vadd.f32 %v761, %v872
      %v874 = vpop.f32.mrb[0].mxu0
      %875 = vmatprep.mubr.bf16.mxu0 0
      %876 = vmatmul.mubr.bf16.gmra.mrb[0].mxu0 %v736
      %v877 = vpop.f32.mrb[0].mxu0
      %v878 = vadd.f32 %v761, %v877
      %v879 = vpop.f32.mrb[0].mxu0
      %v880 = vpop.f32.mrb[0].mxu0
      %v881 = vadd.f32 %v761, %v880
      %v882 = vpop.f32.mrb[0].mxu0
      %883 = vmatprep.mubr.bf16.mxu0 0
      %884 = vmatmul.mubr.bf16.gmra.mrb[0].mxu0 %v737
      %v885 = vpop.f32.mrb[0].mxu0
      %v886 = vadd.f32 %v761, %v885
      %v887 = vpop.f32.mrb[0].mxu0
      %v888 = vpop.f32.mrb[0].mxu0
      %v889 = vadd.f32 %v761, %v888
      %v890 = vpop.f32.mrb[0].mxu0
      %891 = vmatprep.mubr.bf16.mxu0 0
      %892 = vmatmul.mubr.bf16.gmra.mrb[0].mxu0 %v738
      %v893 = vpop.f32.mrb[0].mxu0
      %v894 = vadd.f32 %v761, %v893
      %v895 = vpop.f32.mrb[0].mxu0
      %v896 = vpop.f32.mrb[0].mxu0
      %v897 = vadd.f32 %v761, %v896
      %v898 = vpop.f32.mrb[0].mxu0
      %899 = vmatprep.mubr.bf16.mxu0 0
      %900 = vmatmul.mubr.bf16.gmra.mrb[0].mxu0 %v739
      %v901 = vpop.f32.mrb[0].mxu0
      %v902 = vadd.f32 %v761, %v901
      %v903 = vpop.f32.mrb[0].mxu0
      %v904 = vpop.f32.mrb[0].mxu0
      %v905 = vadd.f32 %v761, %v904
      %v906 = vpop.f32.mrb[0].mxu0
      %907 = vdwg.mxu0
      %v908 = vpack.c.bf16 %v849, %v846
      %v909 = vpack.c.bf16 %v857, %v854
      %v910 = vpack.c.bf16 %v865, %v862
      %v911 = vpack.c.bf16 %v873, %v870
      %v912 = vpack.c.bf16 %v881, %v878
      %v913 = vpack.c.bf16 %v889, %v886
      %v914 = vpack.c.bf16 %v897, %v894
      %v915 = vpack.c.bf16 %v905, %v902
      %v916 = vld [vmem:[#allocation2] sm:$0xff]
      %v917 = vld [vmem:[#allocation2 + $0x8] sm:$0xff]
      %vm918 = vcmask 130048
      %v920 = vsel %vm918, %v908, 0
      %v923 = vsel %vm918, %v909, 0
      %v926 = vsel %vm918, %v910, 0
      %v929 = vsel %vm918, %v911, 0
      %v932 = vsel %vm918, %v912, 0
      %v935 = vsel %vm918, %v913, 0
      %v938 = vsel %vm918, %v914, 0
      %v941 = vsel %vm918, %v915, 0
      %943 = vmatprep.subr.bf16.mxu0 %v917
      %944 = vmatpush1.bf16.msra.mxu0 %v916
      %945 = vmatprep.subr.bf16.mxu0 0
      %946 = vmatpush1.bf16.msra.mxu0 0
      %947 = vmatprep.subr.bf16.mxu0 0
      %948 = vmatpush1.bf16.msra.mxu0 0
      %949 = vmatprep.subr.bf16.mxu0 0
      %950 = vmatpush1.bf16.msra.mxu0 0
      %951 = vmatprep.subr.bf16.mxu0 0
      %952 = vmatpush1.bf16.msra.mxu0 0
      %953 = vmatprep.subr.bf16.mxu0 0
      %954 = vmatpush1.bf16.msra.mxu0 0
      %955 = vmatprep.subr.bf16.mxu0 0
      %956 = vmatpush1.bf16.msra.mxu0 0
      %957 = vmatprep.subr.bf16.mxu0 0
      %958 = vmatpush1.bf16.msra.mxu0 0
      %959 = vmatprep.subr.bf16.mxu0 0
      %960 = vmatpush1.bf16.msra.mxu0 0
      %961 = vmatprep.subr.bf16.mxu0 0
      %962 = vmatpush1.bf16.msra.mxu0 0
      %963 = vmatprep.subr.bf16.mxu0 0
      %964 = vmatpush1.bf16.msra.mxu0 0
      %965 = vmatprep.subr.bf16.mxu0 0
      %966 = vmatpush1.bf16.msra.mxu0 0
      %967 = vmatprep.subr.bf16.mxu0 0
      %968 = vmatpush1.bf16.msra.mxu0 0
      %969 = vmatprep.subr.bf16.mxu0 0
      %970 = vmatpush1.bf16.msra.mxu0 0
      %971 = vmatprep.subr.bf16.mxu0 0
      %972 = vmatpush1.bf16.msra.mxu0 0
      %973 = vmatprep.subr.bf16.mxu0 0
      %974 = vmatpush1.bf16.msra.mxu0 0
      %975 = vmatprep.mubr.bf16.mxu0 0
      %976 = vmatmul.mubr.bf16.gmra.mrb[0].mxu0 %v920
      %v977 = vpop.f32.mrb[0].mxu0
      %v978 = vadd.f32 0.0, %v977
      %v979 = vpop.f32.mrb[0].mxu0
      %v980 = vadd.f32 0.0, %v979
      %v981 = vpop.f32.mrb[0].mxu0
      %v982 = vadd.f32 0.0, %v981
      %v983 = vpop.f32.mrb[0].mxu0
      %v984 = vadd.f32 0.0, %v983
      %985 = vmatprep.mubr.bf16.mxu0 0
      %986 = vmatmul.mubr.bf16.gmra.mrb[0].mxu0 %v923
      %v987 = vpop.f32.mrb[0].mxu0
      %v988 = vadd.f32 0.0, %v987
      %v989 = vpop.f32.mrb[0].mxu0
      %v990 = vadd.f32 0.0, %v989
      %v991 = vpop.f32.mrb[0].mxu0
      %v992 = vadd.f32 0.0, %v991
      %v993 = vpop.f32.mrb[0].mxu0
      %v994 = vadd.f32 0.0, %v993
      %995 = vmatprep.mubr.bf16.mxu0 0
      %996 = vmatmul.mubr.bf16.gmra.mrb[0].mxu0 %v926
      %v997 = vpop.f32.mrb[0].mxu0
      %v998 = vadd.f32 0.0, %v997
      %v999 = vpop.f32.mrb[0].mxu0
      %v1000 = vadd.f32 0.0, %v999
      %v1001 = vpop.f32.mrb[0].mxu0
      %v1002 = vadd.f32 0.0, %v1001
      %v1003 = vpop.f32.mrb[0].mxu0
      %v1004 = vadd.f32 0.0, %v1003
      %1005 = vmatprep.mubr.bf16.mxu0 0
      %1006 = vmatmul.mubr.bf16.gmra.mrb[0].mxu0 %v929
      %v1007 = vpop.f32.mrb[0].mxu0
      %v1008 = vadd.f32 0.0, %v1007
      %v1009 = vpop.f32.mrb[0].mxu0
      %v1010 = vadd.f32 0.0, %v1009
      %v1011 = vpop.f32.mrb[0].mxu0
      %v1012 = vadd.f32 0.0, %v1011
      %v1013 = vpop.f32.mrb[0].mxu0
      %v1014 = vadd.f32 0.0, %v1013
      %1015 = vmatprep.mubr.bf16.mxu0 0
      %1016 = vmatmul.mubr.bf16.gmra.mrb[0].mxu0 %v932
      %v1017 = vpop.f32.mrb[0].mxu0
      %v1018 = vadd.f32 0.0, %v1017
      %v1019 = vpop.f32.mrb[0].mxu0
      %v1020 = vadd.f32 0.0, %v1019
      %v1021 = vpop.f32.mrb[0].mxu0
      %v1022 = vadd.f32 0.0, %v1021
      %v1023 = vpop.f32.mrb[0].mxu0
      %v1024 = vadd.f32 0.0, %v1023
      %1025 = vmatprep.mubr.bf16.mxu0 0
      %1026 = vmatmul.mubr.bf16.gmra.mrb[0].mxu0 %v935
      %v1027 = vpop.f32.mrb[0].mxu0
      %v1028 = vadd.f32 0.0, %v1027
      %v1029 = vpop.f32.mrb[0].mxu0
      %v1030 = vadd.f32 0.0, %v1029
      %v1031 = vpop.f32.mrb[0].mxu0
      %v1032 = vadd.f32 0.0, %v1031
      %v1033 = vpop.f32.mrb[0].mxu0
      %v1034 = vadd.f32 0.0, %v1033
      %1035 = vmatprep.mubr.bf16.mxu0 0
      %1036 = vmatmul.mubr.bf16.gmra.mrb[0].mxu0 %v938
      %v1037 = vpop.f32.mrb[0].mxu0
      %v1038 = vadd.f32 0.0, %v1037
      %v1039 = vpop.f32.mrb[0].mxu0
      %v1040 = vadd.f32 0.0, %v1039
      %v1041 = vpop.f32.mrb[0].mxu0
      %v1042 = vadd.f32 0.0, %v1041
      %v1043 = vpop.f32.mrb[0].mxu0
      %v1044 = vadd.f32 0.0, %v1043
      %1045 = vmatprep.mubr.bf16.mxu0 0
      %1046 = vmatmul.mubr.bf16.gmra.mrb[0].mxu0 %v941
      %v1047 = vpop.f32.mrb[0].mxu0
      %v1048 = vadd.f32 0.0, %v1047
      %v1049 = vpop.f32.mrb[0].mxu0
      %v1050 = vadd.f32 0.0, %v1049
      %v1051 = vpop.f32.mrb[0].mxu0
      %v1052 = vadd.f32 0.0, %v1051
      %v1053 = vpop.f32.mrb[0].mxu0
      %v1054 = vadd.f32 0.0, %v1053
      %1055 = vdwg.mxu0
      %v1056 = vmax.f32 %v978, %v980
      %1057 = vmax.xlane.f32.xlu0 %v1056
      %v1058 = vpop.xlane.xlu0 %1057
      %v1059 = vmax.f32 %v982, %v984
      %1060 = vmax.xlane.f32.xlu0 %v1059
      %v1061 = vpop.xlane.xlu0 %1060
      %v1062 = vmax.f32 %v988, %v990
      %1063 = vmax.xlane.f32.xlu0 %v1062
      %v1064 = vpop.xlane.xlu0 %1063
      %v1065 = vmax.f32 %v992, %v994
      %1066 = vmax.xlane.f32.xlu0 %v1065
      %v1067 = vpop.xlane.xlu0 %1066
      %v1068 = vmax.f32 %v998, %v1000
      %1069 = vmax.xlane.f32.xlu0 %v1068
      %v1070 = vpop.xlane.xlu0 %1069
      %v1071 = vmax.f32 %v1002, %v1004
      %1072 = vmax.xlane.f32.xlu0 %v1071
      %v1073 = vpop.xlane.xlu0 %1072
      %v1074 = vmax.f32 %v1008, %v1010
      %1075 = vmax.xlane.f32.xlu0 %v1074
      %v1076 = vpop.xlane.xlu0 %1075
      %v1077 = vmax.f32 %v1012, %v1014
      %1078 = vmax.xlane.f32.xlu0 %v1077
      %v1079 = vpop.xlane.xlu0 %1078
      %v1080 = vmax.f32 %v1018, %v1020
      %1081 = vmax.xlane.f32.xlu0 %v1080
      %v1082 = vpop.xlane.xlu0 %1081
      %v1083 = vmax.f32 %v1022, %v1024
      %1084 = vmax.xlane.f32.xlu0 %v1083
      %v1085 = vpop.xlane.xlu0 %1084
      %v1086 = vmax.f32 %v1028, %v1030
      %1087 = vmax.xlane.f32.xlu0 %v1086
      %v1088 = vpop.xlane.xlu0 %1087
      %v1089 = vmax.f32 %v1032, %v1034
      %1090 = vmax.xlane.f32.xlu0 %v1089
      %v1091 = vpop.xlane.xlu0 %1090
      %v1092 = vmax.f32 %v1038, %v1040
      %1093 = vmax.xlane.f32.xlu0 %v1092
      %v1094 = vpop.xlane.xlu0 %1093
      %v1095 = vmax.f32 %v1042, %v1044
      %1096 = vmax.xlane.f32.xlu0 %v1095
      %v1097 = vpop.xlane.xlu0 %1096
      %v1098 = vmax.f32 %v1048, %v1050
      %1099 = vmax.xlane.f32.xlu0 %v1098
      %v1100 = vpop.xlane.xlu0 %1099
      %v1101 = vmax.f32 %v1052, %v1054
      %1102 = vmax.xlane.f32.xlu0 %v1101
      %v1103 = vpop.xlane.xlu0 %1102
      %v1104 = vsub.f32 %v978, %v1058
      %v1105 = vsub.f32 %v980, %v1058
      %v1106 = vsub.f32 %v982, %v1061
      %v1107 = vsub.f32 %v984, %v1061
      %v1108 = vsub.f32 %v988, %v1064
      %v1109 = vsub.f32 %v990, %v1064
      %v1110 = vsub.f32 %v992, %v1067
      %v1111 = vsub.f32 %v994, %v1067
      %v1112 = vsub.f32 %v998, %v1070
      %v1113 = vsub.f32 %v1000, %v1070
      %v1114 = vsub.f32 %v1002, %v1073
      %v1115 = vsub.f32 %v1004, %v1073
      %v1116 = vsub.f32 %v1008, %v1076
      %v1117 = vsub.f32 %v1010, %v1076
      %v1118 = vsub.f32 %v1012, %v1079
      %v1119 = vsub.f32 %v1014, %v1079
      %v1120 = vsub.f32 %v1018, %v1082
      %v1121 = vsub.f32 %v1020, %v1082
      %v1122 = vsub.f32 %v1022, %v1085
      %v1123 = vsub.f32 %v1024, %v1085
      %v1124 = vsub.f32 %v1028, %v1088
      %v1125 = vsub.f32 %v1030, %v1088
      %v1126 = vsub.f32 %v1032, %v1091
      %v1127 = vsub.f32 %v1034, %v1091
      %v1128 = vsub.f32 %v1038, %v1094
      %v1129 = vsub.f32 %v1040, %v1094
      %v1130 = vsub.f32 %v1042, %v1097
      %v1131 = vsub.f32 %v1044, %v1097
      %v1132 = vsub.f32 %v1048, %v1100
      %v1133 = vsub.f32 %v1050, %v1100
      %v1134 = vsub.f32 %v1052, %v1103
      %v1135 = vsub.f32 %v1054, %v1103
      %v1136 = vmul.f32 %v1104, 1.442695
      %v1137 = vpow.pop %v1136
      %v1138 = vmul.f32 %v1105, 1.442695
      %v1139 = vpow.pop %v1138
      %v1140 = vmul.f32 %v1106, 1.442695
      %v1141 = vpow.pop %v1140
      %v1142 = vmul.f32 %v1107, 1.442695
      %v1143 = vpow.pop %v1142
      %v1144 = vmul.f32 %v1108, 1.442695
      %v1145 = vpow.pop %v1144
      %v1146 = vmul.f32 %v1109, 1.442695
      %v1147 = vpow.pop %v1146
      %v1148 = vmul.f32 %v1110, 1.442695
      %v1149 = vpow.pop %v1148
      %v1150 = vmul.f32 %v1111, 1.442695
      %v1151 = vpow.pop %v1150
      %v1152 = vmul.f32 %v1112, 1.442695
      %v1153 = vpow.pop %v1152
      %v1154 = vmul.f32 %v1113, 1.442695
      %v1155 = vpow.pop %v1154
      %v1156 = vmul.f32 %v1114, 1.442695
      %v1157 = vpow.pop %v1156
      %v1158 = vmul.f32 %v1115, 1.442695
      %v1159 = vpow.pop %v1158
      %v1160 = vmul.f32 %v1116, 1.442695
      %v1161 = vpow.pop %v1160
      %v1162 = vmul.f32 %v1117, 1.442695
      %v1163 = vpow.pop %v1162
      %v1164 = vmul.f32 %v1118, 1.442695
      %v1165 = vpow.pop %v1164
      %v1166 = vmul.f32 %v1119, 1.442695
      %v1167 = vpow.pop %v1166
      %v1168 = vmul.f32 %v1120, 1.442695
      %v1169 = vpow.pop %v1168
      %v1170 = vmul.f32 %v1121, 1.442695
      %v1171 = vpow.pop %v1170
      %v1172 = vmul.f32 %v1122, 1.442695
      %v1173 = vpow.pop %v1172
      %v1174 = vmul.f32 %v1123, 1.442695
      %v1175 = vpow.pop %v1174
      %v1176 = vmul.f32 %v1124, 1.442695
      %v1177 = vpow.pop %v1176
      %v1178 = vmul.f32 %v1125, 1.442695
      %v1179 = vpow.pop %v1178
      %v1180 = vmul.f32 %v1126, 1.442695
      %v1181 = vpow.pop %v1180
      %v1182 = vmul.f32 %v1127, 1.442695
      %v1183 = vpow.pop %v1182
      %v1184 = vmul.f32 %v1128, 1.442695
      %v1185 = vpow.pop %v1184
      %v1186 = vmul.f32 %v1129, 1.442695
      %v1187 = vpow.pop %v1186
      %v1188 = vmul.f32 %v1130, 1.442695
      %v1189 = vpow.pop %v1188
      %v1190 = vmul.f32 %v1131, 1.442695
      %v1191 = vpow.pop %v1190
      %v1192 = vmul.f32 %v1132, 1.442695
      %v1193 = vpow.pop %v1192
      %v1194 = vmul.f32 %v1133, 1.442695
      %v1195 = vpow.pop %v1194
      %v1196 = vmul.f32 %v1134, 1.442695
      %v1197 = vpow.pop %v1196
      %v1198 = vmul.f32 %v1135, 1.442695
      %v1199 = vpow.pop %v1198
      %v1200 = vadd.f32 %v1137, %v1139
      %1201 = vadd.xlane.f32.xlu0 %v1200
      %v1202 = vpop.xlane.xlu0 %1201
      %v1203 = vadd.f32 %v1141, %v1143
      %1204 = vadd.xlane.f32.xlu0 %v1203
      %v1205 = vpop.xlane.xlu0 %1204
      %v1206 = vadd.f32 %v1145, %v1147
      %1207 = vadd.xlane.f32.xlu0 %v1206
      %v1208 = vpop.xlane.xlu0 %1207
      %v1209 = vadd.f32 %v1149, %v1151
      %1210 = vadd.xlane.f32.xlu0 %v1209
      %v1211 = vpop.xlane.xlu0 %1210
      %v1212 = vadd.f32 %v1153, %v1155
      %1213 = vadd.xlane.f32.xlu0 %v1212
      %v1214 = vpop.xlane.xlu0 %1213
      %v1215 = vadd.f32 %v1157, %v1159
      %1216 = vadd.xlane.f32.xlu0 %v1215
      %v1217 = vpop.xlane.xlu0 %1216
      %v1218 = vadd.f32 %v1161, %v1163
      %1219 = vadd.xlane.f32.xlu0 %v1218
      %v1220 = vpop.xlane.xlu0 %1219
      %v1221 = vadd.f32 %v1165, %v1167
      %1222 = vadd.xlane.f32.xlu0 %v1221
      %v1223 = vpop.xlane.xlu0 %1222
      %v1224 = vadd.f32 %v1169, %v1171
      %1225 = vadd.xlane.f32.xlu0 %v1224
      %v1226 = vpop.xlane.xlu0 %1225
      %v1227 = vadd.f32 %v1173, %v1175
      %1228 = vadd.xlane.f32.xlu0 %v1227
      %v1229 = vpop.xlane.xlu0 %1228
      %v1230 = vadd.f32 %v1177, %v1179
      %1231 = vadd.xlane.f32.xlu0 %v1230
      %v1232 = vpop.xlane.xlu0 %1231
      %v1233 = vadd.f32 %v1181, %v1183
      %1234 = vadd.xlane.f32.xlu0 %v1233
      %v1235 = vpop.xlane.xlu0 %1234
      %v1236 = vadd.f32 %v1185, %v1187
      %1237 = vadd.xlane.f32.xlu0 %v1236
      %v1238 = vpop.xlane.xlu0 %1237
      %v1239 = vadd.f32 %v1189, %v1191
      %1240 = vadd.xlane.f32.xlu0 %v1239
      %v1241 = vpop.xlane.xlu0 %1240
      %v1242 = vadd.f32 %v1193, %v1195
      %1243 = vadd.xlane.f32.xlu0 %v1242
      %v1244 = vpop.xlane.xlu0 %1243
      %v1245 = vadd.f32 %v1197, %v1199
      %1246 = vadd.xlane.f32.xlu0 %v1245
      %v1247 = vpop.xlane.xlu0 %1246
      %v1248 = vrcp.pop %v1202
      %v1249 = vrcp.pop %v1205
      %v1250 = vrcp.pop %v1208
      %v1251 = vrcp.pop %v1211
      %v1252 = vrcp.pop %v1214
      %v1253 = vrcp.pop %v1217
      %v1254 = vrcp.pop %v1220
      %v1255 = vrcp.pop %v1223
      %v1256 = vrcp.pop %v1226
      %v1257 = vrcp.pop %v1229
      %v1258 = vrcp.pop %v1232
      %v1259 = vrcp.pop %v1235
      %v1260 = vrcp.pop %v1238
      %v1261 = vrcp.pop %v1241
      %v1262 = vrcp.pop %v1244
      %v1263 = vrcp.pop %v1247
      %v1264 = vmul.f32 %v1137, %v1248
      %v1265 = vmul.f32 %v1139, %v1248
      %v1266 = vmul.f32 %v1141, %v1249
      %v1267 = vmul.f32 %v1143, %v1249
      %v1268 = vmul.f32 %v1145, %v1250
      %v1269 = vmul.f32 %v1147, %v1250
      %v1270 = vmul.f32 %v1149, %v1251
      %v1271 = vmul.f32 %v1151, %v1251
      %v1272 = vmul.f32 %v1153, %v1252
      %v1273 = vmul.f32 %v1155, %v1252
      %v1274 = vmul.f32 %v1157, %v1253
      %v1275 = vmul.f32 %v1159, %v1253
      %v1276 = vmul.f32 %v1161, %v1254
      %v1277 = vmul.f32 %v1163, %v1254
      %v1278 = vmul.f32 %v1165, %v1255
      %v1279 = vmul.f32 %v1167, %v1255
      %v1280 = vmul.f32 %v1169, %v1256
      %v1281 = vmul.f32 %v1171, %v1256
      %v1282 = vmul.f32 %v1173, %v1257
      %v1283 = vmul.f32 %v1175, %v1257
      %v1284 = vmul.f32 %v1177, %v1258
      %v1285 = vmul.f32 %v1179, %v1258
      %v1286 = vmul.f32 %v1181, %v1259
      %v1287 = vmul.f32 %v1183, %v1259
      %v1288 = vmul.f32 %v1185, %v1260
      %v1289 = vmul.f32 %v1187, %v1260
      %v1290 = vmul.f32 %v1189, %v1261
      %v1291 = vmul.f32 %v1191, %v1261
      %v1292 = vmul.f32 %v1193, %v1262
      %v1293 = vmul.f32 %v1195, %v1262
      %v1294 = vmul.f32 %v1197, %v1263
      %v1295 = vmul.f32 %v1199, %v1263
      %v1296 = vpack.c.bf16 %v1266, %v1264
      %v1297 = vpack.c.bf16 %v1267, %v1265
      %v1298 = vpack.c.bf16 %v1270, %v1268
      %v1299 = vpack.c.bf16 %v1271, %v1269
      %v1300 = vpack.c.bf16 %v1274, %v1272
      %v1301 = vpack.c.bf16 %v1275, %v1273
      %v1302 = vpack.c.bf16 %v1278, %v1276
      %v1303 = vpack.c.bf16 %v1279, %v1277
      %v1304 = vpack.c.bf16 %v1282, %v1280
      %v1305 = vpack.c.bf16 %v1283, %v1281
      %v1306 = vpack.c.bf16 %v1286, %v1284
      %v1307 = vpack.c.bf16 %v1287, %v1285
      %v1308 = vpack.c.bf16 %v1290, %v1288
      %v1309 = vpack.c.bf16 %v1291, %v1289
      %v1310 = vpack.c.bf16 %v1294, %v1292
      %v1311 = vpack.c.bf16 %v1295, %v1293
      %v1312 = vld [vmem:[#allocation3] sm:$0xff]
      %v1313 = vld [vmem:[#allocation3 + $0x8] sm:$0xff]
      %v1314 = vld [vmem:[#allocation3 + $0x10] sm:$0xff]
      %v1315 = vld [vmem:[#allocation3 + $0x18] sm:$0xff]
      %v1316 = vld [vmem:[#allocation3 + $0x20] sm:$0xff]
      %v1317 = vld [vmem:[#allocation3 + $0x28] sm:$0xff]
      %v1318 = vld [vmem:[#allocation3 + $0x30] sm:$0xff]
      %v1319 = vld [vmem:[#allocation3 + $0x38] sm:$0xff]
      %v1320 = vld [vmem:[#allocation3 + $0x40] sm:$0xff]
      %v1321 = vld [vmem:[#allocation3 + $0x48] sm:$0xff]
      %v1322 = vld [vmem:[#allocation3 + $0x50] sm:$0xff]
      %v1323 = vld [vmem:[#allocation3 + $0x58] sm:$0xff]
      %v1324 = vld [vmem:[#allocation3 + $0x60] sm:$0xff]
      %v1325 = vld [vmem:[#allocation3 + $0x68] sm:$0xff]
      %v1326 = vld [vmem:[#allocation3 + $0x70] sm:$0xff]
      %v1327 = vld [vmem:[#allocation3 + $0x78] sm:$0xff]
      %1328 = vmatprep.subr.bf16.mxu0 0
      %1329 = vmatpush1.bf16.msra.mxu0 %v1312
      %1330 = vmatprep.subr.bf16.mxu0 0
      %1331 = vmatpush1.bf16.msra.mxu0 %v1313
      %1332 = vmatprep.subr.bf16.mxu0 0
      %1333 = vmatpush1.bf16.msra.mxu0 %v1314
      %1334 = vmatprep.subr.bf16.mxu0 0
      %1335 = vmatpush1.bf16.msra.mxu0 %v1315
      %1336 = vmatprep.subr.bf16.mxu0 0
      %1337 = vmatpush1.bf16.msra.mxu0 %v1316
      %1338 = vmatprep.subr.bf16.mxu0 0
      %1339 = vmatpush1.bf16.msra.mxu0 %v1317
      %1340 = vmatprep.subr.bf16.mxu0 0
      %1341 = vmatpush1.bf16.msra.mxu0 %v1318
      %1342 = vmatprep.subr.bf16.mxu0 0
      %1343 = vmatpush1.bf16.msra.mxu0 %v1319
      %1344 = vmatprep.subr.bf16.mxu0 0
      %1345 = vmatpush1.bf16.msra.mxu0 %v1320
      %1346 = vmatprep.subr.bf16.mxu0 0
      %1347 = vmatpush1.bf16.msra.mxu0 %v1321
      %1348 = vmatprep.subr.bf16.mxu0 0
      %1349 = vmatpush1.bf16.msra.mxu0 %v1322
      %1350 = vmatprep.subr.bf16.mxu0 0
      %1351 = vmatpush1.bf16.msra.mxu0 %v1323
      %1352 = vmatprep.subr.bf16.mxu0 0
      %1353 = vmatpush1.bf16.msra.mxu0 %v1324
      %1354 = vmatprep.subr.bf16.mxu0 0
      %1355 = vmatpush1.bf16.msra.mxu0 %v1325
      %1356 = vmatprep.subr.bf16.mxu0 0
      %1357 = vmatpush1.bf16.msra.mxu0 %v1326
      %1358 = vmatprep.subr.bf16.mxu0 0
      %1359 = vmatpush1.bf16.msra.mxu0 %v1327
      %1360 = vmatprep.mubr.bf16.mxu0 %v1297
      %1361 = vmatmul.mubr.bf16.gmra.mrb[0].mxu0 %v1296
      %v1362 = vpop.f32.mrb[0].mxu0
      %v1363 = vadd.f32 0.0, %v1362
      %v1364 = vpop.f32.mrb[0].mxu0
      %v1365 = vpop.f32.mrb[0].mxu0
      %v1366 = vadd.f32 0.0, %v1365
      %v1367 = vpop.f32.mrb[0].mxu0
      %1368 = vmatprep.mubr.bf16.mxu0 %v1299
      %1369 = vmatmul.mubr.bf16.gmra.mrb[0].mxu0 %v1298
      %v1370 = vpop.f32.mrb[0].mxu0
      %v1371 = vadd.f32 0.0, %v1370
      %v1372 = vpop.f32.mrb[0].mxu0
      %v1373 = vpop.f32.mrb[0].mxu0
      %v1374 = vadd.f32 0.0, %v1373
      %v1375 = vpop.f32.mrb[0].mxu0
      %1376 = vmatprep.mubr.bf16.mxu0 %v1301
      %1377 = vmatmul.mubr.bf16.gmra.mrb[0].mxu0 %v1300
      %v1378 = vpop.f32.mrb[0].mxu0
      %v1379 = vadd.f32 0.0, %v1378
      %v1380 = vpop.f32.mrb[0].mxu0
      %v1381 = vpop.f32.mrb[0].mxu0
      %v1382 = vadd.f32 0.0, %v1381
      %v1383 = vpop.f32.mrb[0].mxu0
      %1384 = vmatprep.mubr.bf16.mxu0 %v1303
      %1385 = vmatmul.mubr.bf16.gmra.mrb[0].mxu0 %v1302
      %v1386 = vpop.f32.mrb[0].mxu0
      %v1387 = vadd.f32 0.0, %v1386
      %v1388 = vpop.f32.mrb[0].mxu0
      %v1389 = vpop.f32.mrb[0].mxu0
      %v1390 = vadd.f32 0.0, %v1389
      %v1391 = vpop.f32.mrb[0].mxu0
      %1392 = vmatprep.mubr.bf16.mxu0 %v1305
      %1393 = vmatmul.mubr.bf16.gmra.mrb[0].mxu0 %v1304
      %v1394 = vpop.f32.mrb[0].mxu0
      %v1395 = vadd.f32 0.0, %v1394
      %v1396 = vpop.f32.mrb[0].mxu0
      %v1397 = vpop.f32.mrb[0].mxu0
      %v1398 = vadd.f32 0.0, %v1397
      %v1399 = vpop.f32.mrb[0].mxu0
      %1400 = vmatprep.mubr.bf16.mxu0 %v1307
      %1401 = vmatmul.mubr.bf16.gmra.mrb[0].mxu0 %v1306
      %v1402 = vpop.f32.mrb[0].mxu0
      %v1403 = vadd.f32 0.0, %v1402
      %v1404 = vpop.f32.mrb[0].mxu0
      %v1405 = vpop.f32.mrb[0].mxu0
      %v1406 = vadd.f32 0.0, %v1405
      %v1407 = vpop.f32.mrb[0].mxu0
      %1408 = vmatprep.mubr.bf16.mxu0 %v1309
      %1409 = vmatmul.mubr.bf16.gmra.mrb[0].mxu0 %v1308
      %v1410 = vpop.f32.mrb[0].mxu0
      %v1411 = vadd.f32 0.0, %v1410
      %v1412 = vpop.f32.mrb[0].mxu0
      %v1413 = vpop.f32.mrb[0].mxu0
      %v1414 = vadd.f32 0.0, %v1413
      %v1415 = vpop.f32.mrb[0].mxu0
      %1416 = vmatprep.mubr.bf16.mxu0 %v1311
      %1417 = vmatmul.mubr.bf16.gmra.mrb[0].mxu0 %v1310
      %v1418 = vpop.f32.mrb[0].mxu0
      %v1419 = vadd.f32 0.0, %v1418
      %v1420 = vpop.f32.mrb[0].mxu0
      %v1421 = vpop.f32.mrb[0].mxu0
      %v1422 = vadd.f32 0.0, %v1421
      %v1423 = vpop.f32.mrb[0].mxu0
      %1424 = vdwg.mxu0
      %s1425 = sld [smem:[#allocation4]]
      %v1426 = vstv %s1425
      %v1427 = vmul.f32 %v1426, %v1363
      %v1428 = vmul.f32 %v1426, %v1366
      %v1429 = vmul.f32 %v1426, %v1371
      %v1430 = vmul.f32 %v1426, %v1374
      %v1431 = vmul.f32 %v1426, %v1379
      %v1432 = vmul.f32 %v1426, %v1382
      %v1433 = vmul.f32 %v1426, %v1387
      %v1434 = vmul.f32 %v1426, %v1390
      %v1435 = vmul.f32 %v1426, %v1395
      %v1436 = vmul.f32 %v1426, %v1398
      %v1437 = vmul.f32 %v1426, %v1403
      %v1438 = vmul.f32 %v1426, %v1406
      %v1439 = vmul.f32 %v1426, %v1411
      %v1440 = vmul.f32 %v1426, %v1414
      %v1441 = vmul.f32 %v1426, %v1419
      %v1442 = vmul.f32 %v1426, %v1422
      %v1443 = vadd.f32 %v1427, %v716
      %v1444 = vadd.f32 %v1428, %v717
      %v1445 = vadd.f32 %v1429, %v718
      %v1446 = vadd.f32 %v1430, %v719
      %v1447 = vadd.f32 %v1431, %v720
      %v1448 = vadd.f32 %v1432, %v721
      %v1449 = vadd.f32 %v1433, %v722
      %v1450 = vadd.f32 %v1434, %v723
      %v1451 = vadd.f32 %v1435, %v724
      %v1452 = vadd.f32 %v1436, %v725
      %v1453 = vadd.f32 %v1437, %v726
      %v1454 = vadd.f32 %v1438, %v727
      %v1455 = vadd.f32 %v1439, %v728
      %v1456 = vadd.f32 %v1440, %v729
      %v1457 = vadd.f32 %v1441, %v730
      %v1458 = vadd.f32 %v1442, %v731
      %1459 = vst [vmem:[%s328] sm:$0xff] %v1443
      %1460 = vst [vmem:[%s328 + $0x8] sm:$0xff] %v1444
      %1461 = vst [vmem:[%s328 + $0x10] sm:$0xff] %v1445
      %1462 = vst [vmem:[%s328 + $0x18] sm:$0xff] %v1446
      %1463 = vst [vmem:[%s328 + $0x20] sm:$0xff] %v1447
      %1464 = vst [vmem:[%s328 + $0x28] sm:$0xff] %v1448
      %1465 = vst [vmem:[%s328 + $0x30] sm:$0xff] %v1449
      %1466 = vst [vmem:[%s328 + $0x38] sm:$0xff] %v1450
      %1467 = vst [vmem:[%s328 + $0x40] sm:$0xff] %v1451
      %1468 = vst [vmem:[%s328 + $0x48] sm:$0xff] %v1452
      %1469 = vst [vmem:[%s328 + $0x50] sm:$0xff] %v1453
      %1470 = vst [vmem:[%s328 + $0x58] sm:$0xff] %v1454
      %1471 = vst [vmem:[%s328 + $0x60] sm:$0xff] %v1455
      %1472 = vst [vmem:[%s328 + $0x68] sm:$0xff] %v1456
      %1473 = vst [vmem:[%s328 + $0x70] sm:$0xff] %v1457
      %1474 = vst [vmem:[%s328 + $0x78] sm:$0xff] %v1458
      %s1475 = smul.u32 16, %s25
      %p1476 = scmp.lt.s32.totalorder %s24, 1
      %s1477 = scalar_select %p1476, %s24, 1
      %p1478 = scmp.lt.s32.totalorder %s1475, 31
      %s1479 = scalar_select %p1478, %s1475, 31
      %s1480 = smul.addr %s1477, 32
      %s1481 = sadd.s32 %s1479, %s1480
      %s1482 = smul.addr %s1481, 8
      %s1483 = scalar_lea.vmem %s8, %s1482
      // Predicated region
      $region57: #{self_attention_block.1} parent=51 // pred_check
        %p1484 = pneg %p225
      $region58: #{self_attention_block.1} parent=51 // pred_check_branch
        %1486 = sbr.rel (%p1484) target = $region60
      $region59: #{self_attention_block.1} parent=51 // pred_region
        %s1487 = smul.u32 16, %s25
      $region60: #{self_attention_block.1} parent=51 // pred_fallthru
        _
    $region52: #{self_attention_block.1} parent=5 // pred_fallthru
      _
    %p1488 = scmp.le.s32.totalorder 2, %s15
    // Predicated region
    $region61: #{self_attention_block.1} parent=5 // pred_check
      %p1489 = pneg %p1488
    $region62: #{self_attention_block.1} parent=5 // pred_check_branch
      %1491 = sbr.rel (%p1489) target = $region64
    $region63: #{self_attention_block.1} parent=5 // pred_region
      %s1492 = ssub.s32 %s15, 2
      // Predicated region
      $region65: #{self_attention_block.1} parent=63 // pred_check
        %p1493 = pneg %p231
      $region66: #{self_attention_block.1} parent=63 // pred_check_branch
        %1495 = sbr.rel (%p1493) target = $region68
      $region67: #{self_attention_block.1} parent=63 // pred_region
        %s1496 = smul.u32 16, %s27
        %p1497 = scmp.lt.s32.totalorder %s26, 1
        %s1498 = scalar_select %p1497, %s26, 1
        %p1499 = scmp.lt.s32.totalorder %s1496, 31
        %s1500 = scalar_select %p1499, %s1496, 31
        %s1501 = smul.addr %s1498, 32
        %s1502 = sadd.s32 %s1500, %s1501
        %s1503 = smul.addr %s1502, 8
        %s1504 = scalar_lea.vmem %s8, %s1503
      $region68: #{self_attention_block.1} parent=63 // pred_fallthru
        _
    $region64: #{self_attention_block.1} parent=5 // pred_fallthru
      _
  $region6: #{self_attention_block.1} parent=0 // loop_footer
    %s19 = sadd.s32 1, %s15
  $region7: #{self_attention_block.1} parent=0 // loop_footer_branch
    %14 = sbr.rel target = $region3
  $region8: #{self_attention_block.1} parent=0 // loop_exit
    _

</llo_original>
